<compile_context>
chip_gen: v7x
topology: tpu7x:2x2x1
jax: 0.10.0
libtpu: 0.0.40
codegen_flags: <defaults>
</compile_context>

<pallas_src>
import functools

import jax
import jax.numpy as jnp
from jax import lax
from jax.experimental import pallas as pl
from jax.experimental.pallas import tpu as pltpu


# ----------------------------------------------------------------------------- kernel


def fused_double_conv_kernel(
    x_ref,                            # (1, TH+2, W, 9*Cin) bf16: pre-im2col'd conv1 input (row-haloed)
    w1_ref,                           # (9*Cin, Cout) bf16
    w2_ref,                           # (3*Cout, 3*Cout) bf16: rows=(dx,ci), cols=(dy,co)
    s1_ref, b1_ref, s2_ref, b2_ref,   # (1, Cout) f32 folded BN scale/bias (+conv bias)
    o_ref,                            # (1, TH, W*Cout) f32, lane-dense
    t_ref, lhs2_ref,                  # VMEM scratch
    *, TH, W, Cin, Cout):
  h = pl.program_id(1)
  nh = pl.num_programs(1)
  TH2 = TH + 2                        # conv1 rows computed (1-row halo for conv2)

  # --- stage 1: conv3x3 (pre-im2col'd input) + BN + ReLU over TH+2 rows ----------
  lhs1 = x_ref[...].reshape(TH2 * W, 9 * Cin)          # layout-preserving merge
  acc1 = jnp.dot(lhs1, w1_ref[...], preferred_element_type=jnp.float32)
  y1 = jnp.maximum(acc1 * s1_ref[0] + b1_ref[0], 0.0).reshape(TH2, W, Cout)

  # VMEM-resident intermediate; zero only the two border columns (conv2 SAME pad in W).
  t_ref[:, 1:W + 1, :] = y1.astype(t_ref.dtype)
  t_ref[:, 0:1, :] = jnp.zeros((TH2, 1, Cout), t_ref.dtype)
  t_ref[:, W + 1:W + 2, :] = jnp.zeros((TH2, 1, Cout), t_ref.dtype)

  # Conv2's SAME padding zero-pads conv1's *output*: halo rows outside the image
  # must be exactly zero.  Only the top/bottom image tiles can be out of range.
  @pl.when(h == 0)
  def _():
    t_ref[0:1, :, :] = jnp.zeros((1, W + 2, Cout), t_ref.dtype)

  @pl.when(h == nh - 1)
  def _():
    t_ref[TH + 1:TH + 2, :, :] = jnp.zeros((1, W + 2, Cout), t_ref.dtype)

  # --- stage 2: conv3x3 + BN + ReLU, dy stacked along the MXU N axis --------------
  # LHS im2col needs only the 3 dx shifts (K = 3*Cout); one deep matmul produces the
  # per-dy partial sums side by side, reduced afterwards with a row-shifted f32 add.
  t = t_ref[...]
  for dx in range(3):                 # 3 slab copies (was 9)
    lhs2_ref[:, dx * Cout:(dx + 1) * Cout] = (
        t[:, dx:dx + W, :].reshape(TH2 * W, Cout))
  p = jnp.dot(lhs2_ref[...], w2_ref[...], preferred_element_type=jnp.float32)
  p = p.reshape(TH2, W, 3 * Cout)
  raw = (p[0:TH, :, 0:Cout]
         + p[1:TH + 1, :, Cout:2 * Cout]
         + p[2:TH + 2, :, 2 * Cout:3 * Cout])
  y2 = jnp.maximum(raw * s2_ref[0] + b2_ref[0], 0.0)   # (TH, W, Cout) f32

  # Lane-dense store: last dim W*Cout.
  o_ref[0] = y2.reshape(TH, W * Cout).astype(o_ref.dtype)


# ----------------------------------------------------------------------------- sizing


def _round_up(x, m):
  return ((x + m - 1) // m) * m


def _padded_bytes(shape, dtype):
  """Bytes of a VMEM buffer including (sublane, 128-lane) tile padding."""
  item = jnp.dtype(dtype).itemsize
  sub = {4: 8, 2: 16, 1: 32}.get(item, 8)
  dims = list(shape)
  dims[-1] = _round_up(dims[-1], 128)
  if len(dims) >= 2:
    dims[-2] = _round_up(dims[-2], sub)
  n = 1
  for d in dims:
    n *= d
  return n * item


def _tile_vmem_bytes(th, W, cin, cout):
  """Per-grid-step VMEM working set (padded footprints) for row-tile height th."""
  x_blk = _padded_bytes((th + 2, W, 9 * cin), jnp.bfloat16)       # input block
  o_blk = _padded_bytes((th, W * cout), jnp.float32)               # output block
  t_buf = _padded_bytes((th + 2, W + 2, cout), jnp.bfloat16)       # conv1 output
  lhs2 = _padded_bytes(((th + 2) * W, 3 * cout), jnp.bfloat16)     # conv2 im2col
  p_buf = _padded_bytes(((th + 2) * W, 3 * cout), jnp.float32)     # matmul result
  y1 = _padded_bytes(((th + 2) * W, cout), jnp.float32)            # conv1 accum
  wts = (_padded_bytes((9 * cin, cout), jnp.bfloat16)
         + _padded_bytes((3 * cout, 3 * cout), jnp.bfloat16))
  return 2 * (x_blk + o_blk) + t_buf + lhs2 + p_buf + y1 + wts     # x2: dbl-buffered I/O


def _vmem_limits():
  """Generation-aware (vmem_limit_bytes, tiling budget)."""
  cap = 64 * 1024 * 1024                      # conservative default (v7x per-core)
  try:
    info = pltpu.get_tpu_info()
    c = int(getattr(info, "vmem_capacity_bytes", 0) or 0)
    if c > 0:
      cap = c
  except Exception:
    pass
  # 128 MiB parts (v5e/v6e) -> 96 MiB; 64 MiB parts (v7x) -> 48 MiB.
  limit = max(min(cap - 8 * 1024 * 1024, int(cap * 0.75)), 16 * 1024 * 1024)
  budget = int(limit * 0.8)                   # headroom for compiler scratch/relayouts
  return limit, budget


def _pick_tile_h(H, W, cin, cout, budget_bytes):
  """Largest 8-aligned divisor of H that fits the budget; prefers nh >= 2 so both
  v7x TensorCores (and the software pipeline) have work.  Guarded fallbacks."""
  cands = [d for d in range(8, H + 1, 8) if H % d == 0]
  if not cands:
    return H                                   # tiny / odd H: whole image
  fits = [d for d in cands if _tile_vmem_bytes(d, W, cin, cout) <= budget_bytes]
  if not fits:
    # TODO(synk): no 8-aligned row tile fits the budget (very wide images); a
    # column-tiled blocking would be needed — fall back to the smallest row tile.
    return min(cands)
  multi = [d for d in fits if H // d >= 2]
  return max(multi) if multi else max(fits)


# ----------------------------------------------------------------------------- wrapper


def _conv1_im2col_tiles(x_nhwc_bf16, TH):
  """(N,H,W,Cin) -> (N*nh, TH+2, W, 9*Cin): conv1 im2col + 1-row halo tiling.

  Row r of the im2col tensor carries the 9 SAME-padded taps for conv1 output row r
  (tap order (dy, dx, ci), matching w1.reshape(9*Cin, Cout))."""
  N, H, W, Cin = x_nhwc_bf16.shape
  nh = H // TH
  xp = jnp.pad(x_nhwc_bf16, ((0, 0), (1, 1), (1, 1), (0, 0)))
  taps = [xp[:, dy:dy + H, dx:dx + W, :] for dy in range(3) for dx in range(3)]
  x9 = jnp.concatenate(taps, axis=-1)                       # (N, H, W, 9*Cin)
  x9 = jnp.pad(x9, ((0, 0), (1, 1), (0, 0), (0, 0)))        # row-halo source
  rows = jnp.arange(nh)[:, None] * TH + jnp.arange(TH + 2)[None, :]
  x9 = x9[:, rows]                                          # (N, nh, TH+2, W, 9*Cin)
  return x9.reshape(N * nh, TH + 2, W, 9 * Cin)


def double_conv_fused(x_nhwc, w1_hwio, s1, b1, w2_hwio, s2, b2):
  """Fused (conv3x3 -> affine -> ReLU) * 2, SAME padding.  NHWC in/out (f32)."""
  N, H, W, Cin = x_nhwc.shape
  Cout = w1_hwio.shape[-1]

  vmem_limit, budget = _vmem_limits()
  TH = _pick_tile_h(H, W, Cin, Cout, budget)
  assert H % TH == 0
  nh = H // TH

  # bf16 MXU inputs, f32 accumulation in-kernel.
  xb = x_nhwc.astype(jnp.bfloat16)
  x9 = _conv1_im2col_tiles(xb, TH)                          # (N*nh, TH+2, W, 9*Cin)
  w1r = w1_hwio.reshape(9 * Cin, Cout).astype(jnp.bfloat16)
  # rows = (dx, ci), cols = (dy, co)
  w2s = jnp.transpose(w2_hwio, (1, 2, 0, 3)).reshape(3 * Cout, 3 * Cout).astype(jnp.bfloat16)
  s1r = s1.reshape(1, Cout).astype(jnp.float32)
  b1r = b1.reshape(1, Cout).astype(jnp.float32)
  s2r = s2.reshape(1, Cout).astype(jnp.float32)
  b2r = b2.reshape(1, Cout).astype(jnp.float32)

  kernel = functools.partial(
      fused_double_conv_kernel, TH=TH, W=W, Cin=Cin, Cout=Cout)

  rows = N * nh * (TH + 2) * W
  flops = 2 * rows * 9 * Cin * Cout + 2 * rows * 9 * Cout * Cout
  bytes_accessed = (x9.size * 2 + N * H * W * Cout * 4
                    + (9 * Cin * Cout + 9 * Cout * Cout) * 2 + 4 * Cout * 4)

  out = pl.pallas_call(
      kernel,
      out_shape=jax.ShapeDtypeStruct((N, H, W * Cout), jnp.float32),
      grid=(N, nh),
      in_specs=[
          pl.BlockSpec((1, TH + 2, W, 9 * Cin), lambda n, h: (n * nh + h, 0, 0, 0)),
          pl.BlockSpec((9 * Cin, Cout), lambda n, h: (0, 0)),
          pl.BlockSpec((3 * Cout, 3 * Cout), lambda n, h: (0, 0)),
          pl.BlockSpec((1, Cout), lambda n, h: (0, 0)),
          pl.BlockSpec((1, Cout), lambda n, h: (0, 0)),
          pl.BlockSpec((1, Cout), lambda n, h: (0, 0)),
          pl.BlockSpec((1, Cout), lambda n, h: (0, 0)),
      ],
      out_specs=pl.BlockSpec((1, TH, W * Cout), lambda n, h: (n, h, 0)),
      scratch_shapes=[
          pltpu.VMEM((TH + 2, W + 2, Cout), jnp.bfloat16),          # conv1 output (+halo)
          pltpu.VMEM(((TH + 2) * W, 3 * Cout), jnp.bfloat16),       # conv2 im2col (3 dx)
      ],
      compiler_params=pltpu.CompilerParams(
          dimension_semantics=("parallel", "parallel"),
          vmem_limit_bytes=vmem_limit,
      ),
      cost_estimate=pl.CostEstimate(
          flops=flops, transcendentals=0, bytes_accessed=bytes_accessed),
  )(x9, w1r, w2s, s1r, b1r, s2r, b2r)

  return out.reshape(N, H, W, Cout)


# ----------------------------------------------------------------------------- params / fold


def fold_bn(conv_bias, gamma, beta, running_mean, running_var, eps=1e-5):
  scale = gamma / jnp.sqrt(running_var + eps)
  bias = (conv_bias - running_mean) * scale + beta
  return scale, bias


def init_params(key, in_channels, out_channels):
  ks = jax.random.split(key, 8)
  p = {}
  p["w1"] = 0.1 * jax.random.normal(ks[0], (3, 3, in_channels, out_channels), jnp.float32)
  p["cb1"] = 0.1 * jax.random.normal(ks[1], (out_channels,), jnp.float32)
  p["w2"] = 0.1 * jax.random.normal(ks[2], (3, 3, out_channels, out_channels), jnp.float32)
  p["cb2"] = 0.1 * jax.random.normal(ks[3], (out_channels,), jnp.float32)
  p["g1"] = 1.0 + 0.1 * jax.random.normal(ks[4], (out_channels,), jnp.float32)
  p["be1"] = 0.1 * jax.random.normal(ks[5], (out_channels,), jnp.float32)
  p["m1"] = jnp.zeros((out_channels,), jnp.float32)
  p["v1"] = jnp.ones((out_channels,), jnp.float32)
  p["g2"] = 1.0 + 0.1 * jax.random.normal(ks[6], (out_channels,), jnp.float32)
  p["be2"] = 0.1 * jax.random.normal(ks[7], (out_channels,), jnp.float32)
  p["m2"] = jnp.zeros((out_channels,), jnp.float32)
  p["v2"] = jnp.ones((out_channels,), jnp.float32)
  return p


@jax.jit
def inconv_forward(x_nchw, params):
  """Matches inconv.forward: NCHW in, NCHW out (inference mode)."""
  # TODO(synk): the NCHW<->NHWC transposes are wrapper-side XLA ops; in a full UNet
  # the surrounding stages would stay NHWC and these transposes disappear.
  x = jnp.transpose(x_nchw, (0, 2, 3, 1))        # NCHW -> NHWC
  s1, b1 = fold_bn(params["cb1"], params["g1"], params["be1"], params["m1"], params["v1"])
  s2, b2 = fold_bn(params["cb2"], params["g2"], params["be2"], params["m2"], params["v2"])
  y = double_conv_fused(x, params["w1"], s1, b1, params["w2"], s2, b2)
  return jnp.transpose(y, (0, 3, 1, 2))          # NHWC -> NCHW


def reference_forward(x_nchw, params):
  """Pure-JAX reference (lax.conv) with the same bf16 input quantization as the kernel."""
  x = jnp.transpose(x_nchw, (0, 2, 3, 1))
  s1, b1 = fold_bn(params["cb1"], params["g1"], params["be1"], params["m1"], params["v1"])
  s2, b2 = fold_bn(params["cb2"], params["g2"], params["be2"], params["m2"], params["v2"])
  dn = ("NHWC", "HWIO", "NHWC")
  y = lax.conv_general_dilated(x.astype(jnp.bfloat16), params["w1"].astype(jnp.bfloat16),
                               (1, 1), "SAME", dimension_numbers=dn,
                               preferred_element_type=jnp.float32)
  y = jnp.maximum(y * s1 + b1, 0.0)
  y = lax.conv_general_dilated(y.astype(jnp.bfloat16), params["w2"].astype(jnp.bfloat16),
                               (1, 1), "SAME", dimension_numbers=dn,
                               preferred_element_type=jnp.float32)
  y = jnp.maximum(y * s2 + b2, 0.0)
  return jnp.transpose(y, (0, 3, 1, 2))


if __name__ == "__main__":
  key = jax.random.PRNGKey(0)
  k_x, k_p = jax.random.split(key)

  N, C_in, H, W = 2, 4, 16, 16
  C_out = 8

  x = jax.random.normal(k_x, (N, C_in, H, W), jnp.float32)
  params = init_params(k_p, C_in, C_out)

  out = jax.block_until_ready(inconv_forward(x, params))
  ref = reference_forward(x, params)

  assert out.shape == (N, C_out, H, W)
  max_diff = float(jnp.max(jnp.abs(out - ref)))
  assert jnp.allclose(out, ref, atol=1e-2, rtol=1e-2), (
      f"mismatch vs lax.conv reference, max abs diff = {max_diff}")

  print("KERNEL_OK")
</pallas_src>

<mosaic_0001>
module attributes {stable_mosaic.version = 11 : i64} {
  func.func @fused_double_conv_kernel(%arg0: i32, %arg1: i32, %arg2: memref<1x10x16x36xbf16, #tpu.memory_space<vmem>>, %arg3: memref<36x8xbf16, #tpu.memory_space<vmem>>, %arg4: memref<24x24xbf16, #tpu.memory_space<vmem>>, %arg5: memref<1x8xf32, #tpu.memory_space<vmem>>, %arg6: memref<1x8xf32, #tpu.memory_space<vmem>>, %arg7: memref<1x8xf32, #tpu.memory_space<vmem>>, %arg8: memref<1x8xf32, #tpu.memory_space<vmem>>, %arg9: memref<1x8x128xf32, #tpu.memory_space<vmem>>, %arg10: memref<10x18x8xbf16, #tpu.memory_space<vmem>>, %arg11: memref<160x24xbf16, #tpu.memory_space<vmem>>) attributes {dimension_semantics = [#tpu.dimension_semantics<parallel>, #tpu.dimension_semantics<parallel>], iteration_bounds = array<i64: 2, 2>, scalar_prefetch = 0 : i64, scratch_operands = 2 : i64, tpu.core_type = #tpu.core_type<tc>, window_params = [{transform_indices = @transform_0, window_bounds = array<i64: 1, 10, 16, 36>}, {pipeline_mode = #tpu.pipeline_mode<synchronous>, transform_indices = @transform_1, window_bounds = array<i64: 36, 8>}, {pipeline_mode = #tpu.pipeline_mode<synchronous>, transform_indices = @transform_2, window_bounds = array<i64: 24, 24>}, {pipeline_mode = #tpu.pipeline_mode<synchronous>, transform_indices = @transform_3, window_bounds = array<i64: 1, 8>}, {pipeline_mode = #tpu.pipeline_mode<synchronous>, transform_indices = @transform_4, window_bounds = array<i64: 1, 8>}, {pipeline_mode = #tpu.pipeline_mode<synchronous>, transform_indices = @transform_5, window_bounds = array<i64: 1, 8>}, {pipeline_mode = #tpu.pipeline_mode<synchronous>, transform_indices = @transform_6, window_bounds = array<i64: 1, 8>}, {transform_indices = @transform_7, window_bounds = array<i64: 1, 8, 128>}]} {
    %c0 = arith.constant 0 : index
    %c0_0 = arith.constant 0 : index
    %c0_1 = arith.constant 0 : index
    %c0_2 = arith.constant 0 : index
    %0 = vector.load %arg2[%c0, %c0_0, %c0_1, %c0_2] : memref<1x10x16x36xbf16, #tpu.memory_space<vmem>>, vector<1x10x16x36xbf16>
    %1 = vector.shape_cast %0 : vector<1x10x16x36xbf16> to vector<160x36xbf16>
    %c0_3 = arith.constant 0 : index
    %c0_4 = arith.constant 0 : index
    %2 = vector.load %arg3[%c0_3, %c0_4] : memref<36x8xbf16, #tpu.memory_space<vmem>>, vector<36x8xbf16>
    %cst = arith.constant dense<0.000000e+00> : vector<160x8xf32>
    %3 = tpu.matmul %1, %2, %cst {dimension_numbers = #tpu.dot_dimension_numbers<[1], [0], [0], [1], [0, 0, 1, 1], [], []>} : vector<160x36xbf16>, vector<36x8xbf16>, vector<160x8xf32> -> vector<160x8xf32>
    %c0_5 = arith.constant 0 : index
    %c0_6 = arith.constant 0 : index
    %4 = vector.load %arg5[%c0_5, %c0_6] : memref<1x8xf32, #tpu.memory_space<vmem>>, vector<1x8xf32>
    %5 = vector.shape_cast %4 : vector<1x8xf32> to vector<8xf32>
    %6 = vector.shape_cast %5 : vector<8xf32> to vector<1x8xf32>
    %7 = vector.broadcast %6 : vector<1x8xf32> to vector<160x8xf32>
    %8 = arith.mulf %3, %7 : vector<160x8xf32>
    %c0_7 = arith.constant 0 : index
    %c0_8 = arith.constant 0 : index
    %9 = vector.load %arg6[%c0_7, %c0_8] : memref<1x8xf32, #tpu.memory_space<vmem>>, vector<1x8xf32>
    %10 = vector.shape_cast %9 : vector<1x8xf32> to vector<8xf32>
    %11 = vector.shape_cast %10 : vector<8xf32> to vector<1x8xf32>
    %12 = vector.broadcast %11 : vector<1x8xf32> to vector<160x8xf32>
    %13 = arith.addf %8, %12 : vector<160x8xf32>
    %cst_9 = arith.constant 0.000000e+00 : f32
    %14 = vector.broadcast %cst_9 : f32 to vector<160x8xf32>
    %15 = arith.maximumf %13, %14 : vector<160x8xf32>
    %16 = vector.shape_cast %15 : vector<160x8xf32> to vector<10x16x8xf32>
    %17 = arith.truncf %16 : vector<10x16x8xf32> to vector<10x16x8xbf16>
    %c0_10 = arith.constant 0 : index
    %c1 = arith.constant 1 : index
    %c0_11 = arith.constant 0 : index
    %18 = vector.load %arg10[%c0_10, %c1, %c0_11] : memref<10x18x8xbf16, #tpu.memory_space<vmem>>, vector<10x16x8xbf16>
    tpu.vector_store %arg10[%c0_10, %c1, %c0_11], %17 {strides = array<i32>} : memref<10x18x8xbf16, #tpu.memory_space<vmem>>, vector<10x16x8xbf16>,
    %cst_12 = arith.constant 0.000000e+00 : bf16
    %19 = vector.broadcast %cst_12 : bf16 to vector<10x1x8xbf16>
    %c0_13 = arith.constant 0 : index
    %c0_14 = arith.constant 0 : index
    %c0_15 = arith.constant 0 : index
    %20 = vector.load %arg10[%c0_13, %c0_14, %c0_15] : memref<10x18x8xbf16, #tpu.memory_space<vmem>>, vector<10x1x8xbf16>
    tpu.vector_store %arg10[%c0_13, %c0_14, %c0_15], %19 {strides = array<i32>} : memref<10x18x8xbf16, #tpu.memory_space<vmem>>, vector<10x1x8xbf16>,
    %cst_16 = arith.constant 0.000000e+00 : bf16
    %21 = vector.broadcast %cst_16 : bf16 to vector<10x1x8xbf16>
    %c0_17 = arith.constant 0 : index
    %c17 = arith.constant 17 : index
    %c0_18 = arith.constant 0 : index
    %22 = vector.load %arg10[%c0_17, %c17, %c0_18] : memref<10x18x8xbf16, #tpu.memory_space<vmem>>, vector<10x1x8xbf16>
    tpu.vector_store %arg10[%c0_17, %c17, %c0_18], %21 {strides = array<i32>} : memref<10x18x8xbf16, #tpu.memory_space<vmem>>, vector<10x1x8xbf16>,
    %c0_i32 = arith.constant 0 : i32
    %23 = arith.cmpi eq, %arg1, %c0_i32 : i32
    %24 = arith.extui %23 : i1 to i32
    %c0_i32_19 = arith.constant 0 : i32
    %25 = arith.cmpi ne, %24, %c0_i32_19 : i32
    scf.if %25 {
      %cst_41 = arith.constant 0.000000e+00 : bf16
      %64 = vector.broadcast %cst_41 : bf16 to vector<1x18x8xbf16>
      %c0_42 = arith.constant 0 : index
      %c0_43 = arith.constant 0 : index
      %c0_44 = arith.constant 0 : index
      %65 = vector.load %arg10[%c0_42, %c0_43, %c0_44] : memref<10x18x8xbf16, #tpu.memory_space<vmem>>, vector<1x18x8xbf16>
      tpu.vector_store %arg10[%c0_42, %c0_43, %c0_44], %64 {strides = array<i32>} : memref<10x18x8xbf16, #tpu.memory_space<vmem>>, vector<1x18x8xbf16>,
    } else {
    }
    %c1_i32 = arith.constant 1 : i32
    %26 = arith.cmpi eq, %arg1, %c1_i32 : i32
    %27 = arith.extui %26 : i1 to i32
    %c0_i32_20 = arith.constant 0 : i32
    %28 = arith.cmpi ne, %27, %c0_i32_20 : i32
    scf.if %28 {
      %cst_41 = arith.constant 0.000000e+00 : bf16
      %64 = vector.broadcast %cst_41 : bf16 to vector<1x18x8xbf16>
      %c9 = arith.constant 9 : index
      %c0_42 = arith.constant 0 : index
      %c0_43 = arith.constant 0 : index
      %65 = vector.load %arg10[%c9, %c0_42, %c0_43] : memref<10x18x8xbf16, #tpu.memory_space<vmem>>, vector<1x18x8xbf16>
      tpu.vector_store %arg10[%c9, %c0_42, %c0_43], %64 {strides = array<i32>} : memref<10x18x8xbf16, #tpu.memory_space<vmem>>, vector<1x18x8xbf16>,
    } else {
    }
    %c0_21 = arith.constant 0 : index
    %c0_22 = arith.constant 0 : index
    %c0_23 = arith.constant 0 : index
    %29 = vector.load %arg10[%c0_21, %c0_22, %c0_23] : memref<10x18x8xbf16, #tpu.memory_space<vmem>>, vector<10x18x8xbf16>
    %30 = vector.extract_strided_slice %29 {offsets = [0, 0, 0], sizes = [10, 16, 8], strides = [1, 1, 1]} : vector<10x18x8xbf16> to vector<10x16x8xbf16>
    %31 = vector.shape_cast %30 : vector<10x16x8xbf16> to vector<160x8xbf16>
    %c0_24 = arith.constant 0 : index
    %c0_25 = arith.constant 0 : index
    %32 = vector.load %arg11[%c0_24, %c0_25] : memref<160x24xbf16, #tpu.memory_space<vmem>>, vector<160x8xbf16>
    tpu.vector_store %arg11[%c0_24, %c0_25], %31 {strides = array<i32>} : memref<160x24xbf16, #tpu.memory_space<vmem>>, vector<160x8xbf16>,
    %33 = vector.extract_strided_slice %29 {offsets = [0, 1, 0], sizes = [10, 16, 8], strides = [1, 1, 1]} : vector<10x18x8xbf16> to vector<10x16x8xbf16>
    %34 = vector.shape_cast %33 : vector<10x16x8xbf16> to vector<160x8xbf16>
    %c0_26 = arith.constant 0 : index
    %c8 = arith.constant 8 : index
    %35 = vector.load %arg11[%c0_26, %c8] : memref<160x24xbf16, #tpu.memory_space<vmem>>, vector<160x8xbf16>
    tpu.vector_store %arg11[%c0_26, %c8], %34 {strides = array<i32>} : memref<160x24xbf16, #tpu.memory_space<vmem>>, vector<160x8xbf16>,
    %36 = vector.extract_strided_slice %29 {offsets = [0, 2, 0], sizes = [10, 16, 8], strides = [1, 1, 1]} : vector<10x18x8xbf16> to vector<10x16x8xbf16>
    %37 = vector.shape_cast %36 : vector<10x16x8xbf16> to vector<160x8xbf16>
    %c0_27 = arith.constant 0 : index
    %c16 = arith.constant 16 : index
    %38 = vector.load %arg11[%c0_27, %c16] : memref<160x24xbf16, #tpu.memory_space<vmem>>, vector<160x8xbf16>
    tpu.vector_store %arg11[%c0_27, %c16], %37 {strides = array<i32>} : memref<160x24xbf16, #tpu.memory_space<vmem>>, vector<160x8xbf16>,
    %c0_28 = arith.constant 0 : index
    %c0_29 = arith.constant 0 : index
    %39 = vector.load %arg11[%c0_28, %c0_29] : memref<160x24xbf16, #tpu.memory_space<vmem>>, vector<160x24xbf16>
    %c0_30 = arith.constant 0 : index
    %c0_31 = arith.constant 0 : index
    %40 = vector.load %arg4[%c0_30, %c0_31] : memref<24x24xbf16, #tpu.memory_space<vmem>>, vector<24x24xbf16>
    %cst_32 = arith.constant dense<0.000000e+00> : vector<160x24xf32>
    %41 = tpu.matmul %39, %40, %cst_32 {dimension_numbers = #tpu.dot_dimension_numbers<[1], [0], [0], [1], [0, 0, 1, 1], [], []>} : vector<160x24xbf16>, vector<24x24xbf16>, vector<160x24xf32> -> vector<160x24xf32>
    %42 = vector.shape_cast %41 : vector<160x24xf32> to vector<10x16x24xf32>
    %43 = vector.extract_strided_slice %42 {offsets = [0, 0, 0], sizes = [8, 16, 8], strides = [1, 1, 1]} : vector<10x16x24xf32> to vector<8x16x8xf32>
    %44 = vector.extract_strided_slice %42 {offsets = [1, 0, 8], sizes = [8, 16, 8], strides = [1, 1, 1]} : vector<10x16x24xf32> to vector<8x16x8xf32>
    %45 = arith.addf %43, %44 : vector<8x16x8xf32>
    %46 = vector.extract_strided_slice %42 {offsets = [2, 0, 16], sizes = [8, 16, 8], strides = [1, 1, 1]} : vector<10x16x24xf32> to vector<8x16x8xf32>
    %47 = arith.addf %45, %46 : vector<8x16x8xf32>
    %c0_33 = arith.constant 0 : index
    %c0_34 = arith.constant 0 : index
    %48 = vector.load %arg7[%c0_33, %c0_34] : memref<1x8xf32, #tpu.memory_space<vmem>>, vector<1x8xf32>
    %49 = vector.shape_cast %48 : vector<1x8xf32> to vector<8xf32>
    %50 = vector.shape_cast %49 : vector<8xf32> to vector<1x1x8xf32>
    %51 = vector.broadcast %50 : vector<1x1x8xf32> to vector<8x16x8xf32>
    %52 = arith.mulf %47, %51 : vector<8x16x8xf32>
    %c0_35 = arith.constant 0 : index
    %c0_36 = arith.constant 0 : index
    %53 = vector.load %arg8[%c0_35, %c0_36] : memref<1x8xf32, #tpu.memory_space<vmem>>, vector<1x8xf32>
    %54 = vector.shape_cast %53 : vector<1x8xf32> to vector<8xf32>
    %55 = vector.shape_cast %54 : vector<8xf32> to vector<1x1x8xf32>
    %56 = vector.broadcast %55 : vector<1x1x8xf32> to vector<8x16x8xf32>
    %57 = arith.addf %52, %56 : vector<8x16x8xf32>
    %cst_37 = arith.constant 0.000000e+00 : f32
    %58 = vector.broadcast %cst_37 : f32 to vector<8x16x8xf32>
    %59 = arith.maximumf %57, %58 : vector<8x16x8xf32>
    %60 = vector.shape_cast %59 : vector<8x16x8xf32> to vector<8x128xf32>
    %c0_38 = arith.constant 0 : index
    %c0_39 = arith.constant 0 : index
    %c0_40 = arith.constant 0 : index
    %61 = vector.load %arg9[%c0_38, %c0_39, %c0_40] : memref<1x8x128xf32, #tpu.memory_space<vmem>>, vector<1x8x128xf32>
    %62 = vector.shape_cast %61 : vector<1x8x128xf32> to vector<8x128xf32>
    %63 = vector.shape_cast %60 : vector<8x128xf32> to vector<1x8x128xf32>
    tpu.vector_store %arg9[%c0_38, %c0_39, %c0_40], %63 {strides = array<i32>} : memref<1x8x128xf32, #tpu.memory_space<vmem>>, vector<1x8x128xf32>,
    return
  }
  func.func @transform_0(%arg0: i32, %arg1: i32) -> (i32, i32, i32, i32) {
    %c2_i32 = arith.constant 2 : i32
    %0 = arith.muli %arg0, %c2_i32 : i32
    %1 = arith.addi %0, %arg1 : i32
    %c0_i32 = arith.constant 0 : i32
    %c0_i32_0 = arith.constant 0 : i32
    %c0_i32_1 = arith.constant 0 : i32
    %c0_i32_2 = arith.constant 0 : i32
    return %1, %c0_i32, %c0_i32_0, %c0_i32_1 : i32, i32, i32, i32
  }
  func.func @transform_1(%arg0: i32, %arg1: i32) -> (i32, i32) {
    %c0_i32 = arith.constant 0 : i32
    %c0_i32_0 = arith.constant 0 : i32
    %c0_i32_1 = arith.constant 0 : i32
    return %c0_i32, %c0_i32_0 : i32, i32
  }
  func.func @transform_2(%arg0: i32, %arg1: i32) -> (i32, i32) {
    %c0_i32 = arith.constant 0 : i32
    %c0_i32_0 = arith.constant 0 : i32
    %c0_i32_1 = arith.constant 0 : i32
    return %c0_i32, %c0_i32_0 : i32, i32
  }
  func.func @transform_3(%arg0: i32, %arg1: i32) -> (i32, i32) {
    %c0_i32 = arith.constant 0 : i32
    %c0_i32_0 = arith.constant 0 : i32
    %c0_i32_1 = arith.constant 0 : i32
    return %c0_i32, %c0_i32_0 : i32, i32
  }
  func.func @transform_4(%arg0: i32, %arg1: i32) -> (i32, i32) {
    %c0_i32 = arith.constant 0 : i32
    %c0_i32_0 = arith.constant 0 : i32
    %c0_i32_1 = arith.constant 0 : i32
    return %c0_i32, %c0_i32_0 : i32, i32
  }
  func.func @transform_5(%arg0: i32, %arg1: i32) -> (i32, i32) {
    %c0_i32 = arith.constant 0 : i32
    %c0_i32_0 = arith.constant 0 : i32
    %c0_i32_1 = arith.constant 0 : i32
    return %c0_i32, %c0_i32_0 : i32, i32
  }
  func.func @transform_6(%arg0: i32, %arg1: i32) -> (i32, i32) {
    %c0_i32 = arith.constant 0 : i32
    %c0_i32_0 = arith.constant 0 : i32
    %c0_i32_1 = arith.constant 0 : i32
    return %c0_i32, %c0_i32_0 : i32, i32
  }
  func.func @transform_7(%arg0: i32, %arg1: i32) -> (i32, i32, i32) {
    %c0_i32 = arith.constant 0 : i32
    %c0_i32_0 = arith.constant 0 : i32
    return %arg0, %arg1, %c0_i32 : i32, i32, i32
  }
}

</mosaic_0001>

<llo_original>
// kernel: inconv_forward.1
$region0: #{inconv_forward.1}
  #allocation0 [shape = 'u32[]', space=smem, size = 0x4, offset = 0x4, fixed_abs, tag = 'smem constant byte address 0x4 - core index']
  #allocation1 [shape = 'u32[144,128]{1,0:T(1,128)}', space=vmem, size = 0x12000, scoped, tag = 'internal scratch']
  #allocation2 [shape = 'bf16[10,18,8]{2,1,0:T(8,128)(2,1)}', space=vmem, size = 0xf000, scoped, tag = 'scratch operand']
  #allocation3 [shape = 'bf16[160,24]{1,0:T(16,128)(2,1)}', space=vmem, size = 0xa000, scoped, tag = 'scratch operand']
  %s0 = inlined_call_operand.vmem [shape: bf16[4,10,16,36], index: 0, kind: input, shape index: {}]
  %s1 = inlined_call_operand.vmem [shape: bf16[36,8], index: 1, kind: input, shape index: {}]
  %s2 = inlined_call_operand.vmem [shape: bf16[24,24], index: 2, kind: input, shape index: {}]
  %s3 = inlined_call_operand.vmem [shape: f32[1,8], index: 3, kind: input, shape index: {}]
  %s4 = inlined_call_operand.vmem [shape: f32[1,8], index: 4, kind: input, shape index: {}]
  %s5 = inlined_call_operand.vmem [shape: f32[1,8], index: 5, kind: input, shape index: {}]
  %s6 = inlined_call_operand.vmem [shape: f32[1,8], index: 6, kind: input, shape index: {}]
  %s7 = inlined_call_operand.vmem [shape: f32[2,16,128], index: 7, kind: output, shape index: {}]
  %s8 = sld [smem:[#allocation0]]
  $region69: #{inconv_forward.1} parent=0
    _
  %s10 = ssub.s32 1, %s8
  %s11 = scalar_select 0, %s10, %s8
  loop: start=0, step=1, limit=6
  $region2: #{inconv_forward.1} parent=0 // loop_pre_header
    _
  $region3: #{inconv_forward.1} parent=0 // loop_header
    %s13 = sphi 0, %s17
    %p14 = scmp.ge.s32.totalorder %s13, 6
    %s20 = sphi 0, %s32
    %s21 = sphi 0, %s28
    %s22 = sphi 0, %s20
    %s23 = sphi 0, %s21
    %s24 = sphi 0, %s22
    %s25 = sphi 0, %s23
    %s39 = sphi 0, %s41
    %s42 = sphi 0, %s39
    %s43 = sphi 0, %s42
    %s59 = sphi 0, %s43
    %s63 = sphi 0, %s63
    %s65 = sphi 0, %s63
    %s66 = sphi 0, %s65
    %s80 = sphi 0, %s66
    %s84 = sphi 0, %s84
    %s86 = sphi 0, %s84
    %s87 = sphi 0, %s86
    %s101 = sphi 0, %s87
    %s105 = sphi 0, %s105
    %s107 = sphi 0, %s105
    %s108 = sphi 0, %s107
    %s122 = sphi 0, %s108
    %s126 = sphi 0, %s126
    %s128 = sphi 0, %s126
    %s129 = sphi 0, %s128
    %s143 = sphi 0, %s129
    %s147 = sphi 0, %s147
    %s149 = sphi 0, %s147
    %s150 = sphi 0, %s149
    %s164 = sphi 0, %s150
    %s168 = sphi 0, %s168
    %s170 = sphi 0, %s168
    %s171 = sphi 0, %s170
    %s185 = sphi 0, %s171
    %s193 = sphi 0, %s195
    %s196 = sphi 0, %s193
    %s197 = sphi 0, %s196
    %s213 = sphi 0, %s197
  $region4: #{inconv_forward.1} parent=0 // loop_header_branch
    %16 = sbr.rel (%p14) target = $region8
  $region5: #{inconv_forward.1} parent=0 // loop_body
    %s18 = ssub.s32 %s13, 1
    %s19 = ssub.s32 %s13, 2
    %s26 = sadd.s32 1, %s21
    %p27 = scmp.ge.s32.totalorder %s26, 2
    %s28 = scalar_select %p27, 0, %s26
    %s29 = sadd.s32 1, %s20
    %s30 = scalar_select %p27, %s29, %s20
    %p31 = scmp.ge.s32.totalorder %s30, 2
    %s32 = scalar_select %p31, 0, %s30
    %s33 = smul.u32 %s20, 2
    %s34 = sadd.s32 %s33, %s21
    %s35 = smul.u32 %s32, 2
    %s36 = sadd.s32 %s35, %s28
    %s37 = ssub.s32 %s34, %s36
    %p38 = scmp.eq.s32.totalorder %s37, 0
    %s40 = sadd.s32 %s39, 1
    %s41 = scalar_select %p38, %s39, %s40
    %p44 = pneg %p38
    %p45 = scmp.eq.s32.totalorder %s13, 3
    %p46 = por %p44, %p45
    %p47 = scmp.ne.s32.totalorder %s39, %s42
    %p48 = scmp.eq.s32.totalorder %s13, 0
    %p49 = por %p47, %p48
    %p50 = scmp.ne.s32.totalorder %s39, %s42
    %p51 = scmp.eq.s32.totalorder %s18, 3
    %p52 = por %p50, %p51
    %p53 = scmp.ne.s32.totalorder %s42, %s43
    %p54 = scmp.eq.s32.totalorder %s18, 0
    %p55 = por %p53, %p54
    %p56 = scmp.ne.s32.totalorder %s42, %s43
    %p57 = scmp.eq.s32.totalorder %s19, 3
    %p58 = por %p56, %p57
    %p60 = scmp.ne.s32.totalorder %s43, %s59
    %p61 = scmp.eq.s32.totalorder %s19, 0
    %p62 = por %p60, %p61
    %s64 = sadd.s32 %s63, 1
    %p67 = scmp.eq.s32.totalorder %s13, 3
    %p68 = scmp.ne.s32.totalorder %s63, %s65
    %p69 = scmp.eq.s32.totalorder %s13, 0
    %p70 = por %p68, %p69
    %p71 = scmp.ne.s32.totalorder %s63, %s65
    %p72 = scmp.eq.s32.totalorder %s18, 3
    %p73 = por %p71, %p72
    %p74 = scmp.ne.s32.totalorder %s65, %s66
    %p75 = scmp.eq.s32.totalorder %s18, 0
    %p76 = por %p74, %p75
    %p77 = scmp.ne.s32.totalorder %s65, %s66
    %p78 = scmp.eq.s32.totalorder %s19, 3
    %p79 = por %p77, %p78
    %p81 = scmp.ne.s32.totalorder %s66, %s80
    %p82 = scmp.eq.s32.totalorder %s19, 0
    %p83 = por %p81, %p82
    %s85 = sadd.s32 %s84, 1
    %p88 = scmp.eq.s32.totalorder %s13, 3
    %p89 = scmp.ne.s32.totalorder %s84, %s86
    %p90 = scmp.eq.s32.totalorder %s13, 0
    %p91 = por %p89, %p90
    %p92 = scmp.ne.s32.totalorder %s84, %s86
    %p93 = scmp.eq.s32.totalorder %s18, 3
    %p94 = por %p92, %p93
    %p95 = scmp.ne.s32.totalorder %s86, %s87
    %p96 = scmp.eq.s32.totalorder %s18, 0
    %p97 = por %p95, %p96
    %p98 = scmp.ne.s32.totalorder %s86, %s87
    %p99 = scmp.eq.s32.totalorder %s19, 3
    %p100 = por %p98, %p99
    %p102 = scmp.ne.s32.totalorder %s87, %s101
    %p103 = scmp.eq.s32.totalorder %s19, 0
    %p104 = por %p102, %p103
    %s106 = sadd.s32 %s105, 1
    %p109 = scmp.eq.s32.totalorder %s13, 3
    %p110 = scmp.ne.s32.totalorder %s105, %s107
    %p111 = scmp.eq.s32.totalorder %s13, 0
    %p112 = por %p110, %p111
    %p113 = scmp.ne.s32.totalorder %s105, %s107
    %p114 = scmp.eq.s32.totalorder %s18, 3
    %p115 = por %p113, %p114
    %p116 = scmp.ne.s32.totalorder %s107, %s108
    %p117 = scmp.eq.s32.totalorder %s18, 0
    %p118 = por %p116, %p117
    %p119 = scmp.ne.s32.totalorder %s107, %s108
    %p120 = scmp.eq.s32.totalorder %s19, 3
    %p121 = por %p119, %p120
    %p123 = scmp.ne.s32.totalorder %s108, %s122
    %p124 = scmp.eq.s32.totalorder %s19, 0
    %p125 = por %p123, %p124
    %s127 = sadd.s32 %s126, 1
    %p130 = scmp.eq.s32.totalorder %s13, 3
    %p131 = scmp.ne.s32.totalorder %s126, %s128
    %p132 = scmp.eq.s32.totalorder %s13, 0
    %p133 = por %p131, %p132
    %p134 = scmp.ne.s32.totalorder %s126, %s128
    %p135 = scmp.eq.s32.totalorder %s18, 3
    %p136 = por %p134, %p135
    %p137 = scmp.ne.s32.totalorder %s128, %s129
    %p138 = scmp.eq.s32.totalorder %s18, 0
    %p139 = por %p137, %p138
    %p140 = scmp.ne.s32.totalorder %s128, %s129
    %p141 = scmp.eq.s32.totalorder %s19, 3
    %p142 = por %p140, %p141
    %p144 = scmp.ne.s32.totalorder %s129, %s143
    %p145 = scmp.eq.s32.totalorder %s19, 0
    %p146 = por %p144, %p145
    %s148 = sadd.s32 %s147, 1
    %p151 = scmp.eq.s32.totalorder %s13, 3
    %p152 = scmp.ne.s32.totalorder %s147, %s149
    %p153 = scmp.eq.s32.totalorder %s13, 0
    %p154 = por %p152, %p153
    %p155 = scmp.ne.s32.totalorder %s147, %s149
    %p156 = scmp.eq.s32.totalorder %s18, 3
    %p157 = por %p155, %p156
    %p158 = scmp.ne.s32.totalorder %s149, %s150
    %p159 = scmp.eq.s32.totalorder %s18, 0
    %p160 = por %p158, %p159
    %p161 = scmp.ne.s32.totalorder %s149, %s150
    %p162 = scmp.eq.s32.totalorder %s19, 3
    %p163 = por %p161, %p162
    %p165 = scmp.ne.s32.totalorder %s150, %s164
    %p166 = scmp.eq.s32.totalorder %s19, 0
    %p167 = por %p165, %p166
    %s169 = sadd.s32 %s168, 1
    %p172 = scmp.eq.s32.totalorder %s13, 3
    %p173 = scmp.ne.s32.totalorder %s168, %s170
    %p174 = scmp.eq.s32.totalorder %s13, 0
    %p175 = por %p173, %p174
    %p176 = scmp.ne.s32.totalorder %s168, %s170
    %p177 = scmp.eq.s32.totalorder %s18, 3
    %p178 = por %p176, %p177
    %p179 = scmp.ne.s32.totalorder %s170, %s171
    %p180 = scmp.eq.s32.totalorder %s18, 0
    %p181 = por %p179, %p180
    %p182 = scmp.ne.s32.totalorder %s170, %s171
    %p183 = scmp.eq.s32.totalorder %s19, 3
    %p184 = por %p182, %p183
    %p186 = scmp.ne.s32.totalorder %s171, %s185
    %p187 = scmp.eq.s32.totalorder %s19, 0
    %p188 = por %p186, %p187
    %s189 = ssub.s32 %s20, %s32
    %s190 = ssub.s32 %s21, %s28
    %s191 = sor.u32 %s189, %s190
    %p192 = scmp.eq.s32.totalorder %s191, 0
    %s194 = sadd.s32 %s193, 1
    %s195 = scalar_select %p192, %s193, %s194
    %p198 = pneg %p192
    %p199 = scmp.eq.s32.totalorder %s13, 3
    %p200 = por %p198, %p199
    %p201 = scmp.ne.s32.totalorder %s193, %s196
    %p202 = scmp.eq.s32.totalorder %s13, 0
    %p203 = por %p201, %p202
    %p204 = scmp.ne.s32.totalorder %s193, %s196
    %p205 = scmp.eq.s32.totalorder %s18, 3
    %p206 = por %p204, %p205
    %p207 = scmp.ne.s32.totalorder %s196, %s197
    %p208 = scmp.eq.s32.totalorder %s18, 0
    %p209 = por %p207, %p208
    %p210 = scmp.ne.s32.totalorder %s196, %s197
    %p211 = scmp.eq.s32.totalorder %s19, 3
    %p212 = por %p210, %p211
    %p214 = scmp.ne.s32.totalorder %s197, %s213
    %p215 = scmp.eq.s32.totalorder %s19, 0
    %p216 = por %p214, %p215
    %p217 = scmp.le.s32.totalorder 1, %s13
    %p218 = scmp.lt.s32.totalorder %s13, 5
    %p219 = pnand %p217, %p218
    %p220 = pneg %p219
    // Predicated region
    $region9: #{inconv_forward.1} parent=5 // pred_check
      _
    $region10: #{inconv_forward.1} parent=5 // pred_check_branch
      %222 = sbr.rel (%p219) target = $region12
    $region11: #{inconv_forward.1} parent=5 // pred_region
      %s223 = ssub.s32 %s13, 1
      // Predicated region
      $region13: #{inconv_forward.1} parent=11 // pred_check
        %p224 = pneg %p76
      $region14: #{inconv_forward.1} parent=11 // pred_check_branch
        %226 = sbr.rel (%p224) target = $region16
      $region15: #{inconv_forward.1} parent=11 // pred_region
        _
      $region16: #{inconv_forward.1} parent=11 // pred_fallthru
        _
      // Predicated region
      $region17: #{inconv_forward.1} parent=11 // pred_check
        %p227 = pneg %p97
      $region18: #{inconv_forward.1} parent=11 // pred_check_branch
        %229 = sbr.rel (%p227) target = $region20
      $region19: #{inconv_forward.1} parent=11 // pred_region
        _
      $region20: #{inconv_forward.1} parent=11 // pred_fallthru
        _
      // Predicated region
      $region21: #{inconv_forward.1} parent=11 // pred_check
        %p230 = pneg %p118
      $region22: #{inconv_forward.1} parent=11 // pred_check_branch
        %232 = sbr.rel (%p230) target = $region24
      $region23: #{inconv_forward.1} parent=11 // pred_region
        _
      $region24: #{inconv_forward.1} parent=11 // pred_fallthru
        _
      // Predicated region
      $region25: #{inconv_forward.1} parent=11 // pred_check
        %p233 = pneg %p139
      $region26: #{inconv_forward.1} parent=11 // pred_check_branch
        %235 = sbr.rel (%p233) target = $region28
      $region27: #{inconv_forward.1} parent=11 // pred_region
        _
      $region28: #{inconv_forward.1} parent=11 // pred_fallthru
        _
      // Predicated region
      $region29: #{inconv_forward.1} parent=11 // pred_check
        %p236 = pneg %p160
      $region30: #{inconv_forward.1} parent=11 // pred_check_branch
        %238 = sbr.rel (%p236) target = $region32
      $region31: #{inconv_forward.1} parent=11 // pred_region
        _
      $region32: #{inconv_forward.1} parent=11 // pred_fallthru
        _
      // Predicated region
      $region33: #{inconv_forward.1} parent=11 // pred_check
        %p239 = pneg %p181
      $region34: #{inconv_forward.1} parent=11 // pred_check_branch
        %241 = sbr.rel (%p239) target = $region36
      $region35: #{inconv_forward.1} parent=11 // pred_region
        _
      $region36: #{inconv_forward.1} parent=11 // pred_fallthru
        _
    $region12: #{inconv_forward.1} parent=5 // pred_fallthru
      _
    %p242 = scmp.lt.s32.totalorder %s13, 4
    // Predicated region
    $region37: #{inconv_forward.1} parent=5 // pred_check
      %p243 = pneg %p242
    $region38: #{inconv_forward.1} parent=5 // pred_check_branch
      %245 = sbr.rel (%p243) target = $region40
    $region39: #{inconv_forward.1} parent=5 // pred_region
      // Predicated region
      $region41: #{inconv_forward.1} parent=39 // pred_check
        %p246 = pneg %p49
      $region42: #{inconv_forward.1} parent=39 // pred_check_branch
        %248 = sbr.rel (%p246) target = $region44
      $region43: #{inconv_forward.1} parent=39 // pred_region
        %s249 = smul.u32 %s20, 2
        %s250 = sadd.s32 %s249, %s21
        %p251 = scmp.lt.s32.totalorder %s250, 3
        %s252 = scalar_select %p251, %s250, 3
        %s253 = smul.addr %s252, 20
        %s254 = smul.addr %s253, 4
        %s255 = scalar_lea.vmem %s0, %s254
        %s256 = smul.u32 %s20, 2
        %s257 = sadd.s32 %s256, %s21
      $region44: #{inconv_forward.1} parent=39 // pred_fallthru
        _
    $region40: #{inconv_forward.1} parent=5 // pred_fallthru
      _
    %p258 = scmp.le.s32.totalorder 1, %s13
    %p259 = scmp.lt.s32.totalorder %s13, 5
    %p260 = pnand %p258, %p259
    %p261 = pneg %p260
    // Predicated region
    $region45: #{inconv_forward.1} parent=5 // pred_check
      _
    $region46: #{inconv_forward.1} parent=5 // pred_check_branch
      %263 = sbr.rel (%p260) target = $region48
    $region47: #{inconv_forward.1} parent=5 // pred_region
      %s264 = ssub.s32 %s13, 1
      %s265 = smul.u32 %s22, 2
      %s266 = sadd.s32 %s265, %s23
      %p267 = scmp.lt.s32.totalorder %s266, 3
      %s268 = scalar_select %p267, %s266, 3
      %s269 = smul.addr %s268, 20
      %s270 = smul.addr %s269, 4
      %s271 = scalar_lea.vmem %s0, %s270
      %p272 = pneg %p55
      %p273 = pneg %p52
      %p274 = pneg %p76
      %p275 = pneg %p73
      %p276 = pneg %p97
      %p277 = pneg %p94
      %p278 = pneg %p118
      %p279 = pneg %p115
      %p280 = pneg %p139
      %p281 = pneg %p136
      %p282 = pneg %p160
      %p283 = pneg %p157
      %p284 = pneg %p181
      %p285 = pneg %p178
      %p286 = pneg %p209
      %p287 = pneg %p206
      %p288 = scmp.lt.s32.totalorder %s22, 1
      %s289 = scalar_select %p288, %s22, 1
      %p290 = scmp.lt.s32.totalorder %s23, 1
      %s291 = scalar_select %p290, %s23, 1
      %s292 = smul.addr %s289, 2
      %s293 = sadd.s32 %s291, %s292
      %s294 = smul.addr %s293, 8
      %s295 = scalar_lea.vmem %s7, %s294
      %s296 = smul.u32 %s22, 2
      %s297 = sadd.s32 %s296, %s23
      %p298 = scmp.lt.s32.totalorder %s297, 3
      %s299 = scalar_select %p298, %s297, 3
      %s300 = smul.addr %s299, 20
      %s301 = smul.addr %s300, 4
      %s302 = scalar_lea.vmem %s0, %s301
      %s303 = smul.u32 %s22, 2
      %s304 = sadd.s32 %s303, %s23
      %p305 = scmp.lt.s32.totalorder %s22, 1
      %s306 = scalar_select %p305, %s22, 1
      %p307 = scmp.lt.s32.totalorder %s23, 1
      %s308 = scalar_select %p307, %s23, 1
      %s309 = smul.addr %s306, 2
      %s310 = sadd.s32 %s308, %s309
      %s311 = smul.addr %s310, 8
      %s312 = scalar_lea.vmem %s7, %s311
      %v314 = vld [vmem:[%s302] sm:$0xf]
      %v315 = vld [vmem:[%s302 + $0x4] sm:$0xf]
      %v316 = vld [vmem:[%s302 + $0x8] sm:$0xf]
      %v317 = vld [vmem:[%s302 + $0xc] sm:$0xf]
      %v318 = vld [vmem:[%s302 + $0x10] sm:$0xf]
      %v319 = vld [vmem:[%s302 + $0x14] sm:$0xf]
      %v320 = vld [vmem:[%s302 + $0x18] sm:$0xf]
      %v321 = vld [vmem:[%s302 + $0x1c] sm:$0xf]
      %v322 = vld [vmem:[%s302 + $0x20] sm:$0xf]
      %v323 = vld [vmem:[%s302 + $0x24] sm:$0xf]
      %v324 = vld [vmem:[%s302 + $0x28] sm:$0xf]
      %v325 = vld [vmem:[%s302 + $0x2c] sm:$0xf]
      %v326 = vld [vmem:[%s302 + $0x30] sm:$0xf]
      %v327 = vld [vmem:[%s302 + $0x34] sm:$0xf]
      %v328 = vld [vmem:[%s302 + $0x38] sm:$0xf]
      %v329 = vld [vmem:[%s302 + $0x3c] sm:$0xf]
      %v330 = vld [vmem:[%s302 + $0x40] sm:$0xf]
      %v331 = vld [vmem:[%s302 + $0x44] sm:$0xf]
      %v332 = vld [vmem:[%s302 + $0x48] sm:$0xf]
      %v333 = vld [vmem:[%s302 + $0x4c] sm:$0xf]
      %v334 = vld [vmem:[%s1] sm:$0xf]
      %v335 = vld [vmem:[%s1 + $0x4] sm:$0xf]
      %v336 = vld [vmem:[%s1 + $0x8] sm:$0xf]
      %v337 = vld [vmem:[%s1 + $0xc] sm:$0xf]
      %v338 = vld [vmem:[%s1 + $0x10] sm:$0x3]
      %v359 = vunpack.c.l.b16 %v314
      %v360 = vunpack.c.l.b16 %v315
      %v361 = vunpack.c.l.b16 %v316
      %v362 = vunpack.c.l.b16 %v317
      %v363 = vunpack.c.l.b16 %v318
      %v364 = vunpack.c.l.b16 %v319
      %v365 = vunpack.c.l.b16 %v320
      %v366 = vunpack.c.l.b16 %v321
      %v367 = vunpack.c.l.b16 %v322
      %v368 = vunpack.c.l.b16 %v323
      %v369 = vunpack.c.l.b16 %v324
      %v370 = vunpack.c.l.b16 %v325
      %v371 = vunpack.c.l.b16 %v326
      %v372 = vunpack.c.l.b16 %v327
      %v373 = vunpack.c.l.b16 %v328
      %v374 = vunpack.c.l.b16 %v329
      %v375 = vunpack.c.l.b16 %v330
      %v376 = vunpack.c.l.b16 %v331
      %v377 = vunpack.c.l.b16 %v332
      %v378 = vunpack.c.l.b16 %v333
      %v379 = vpack.c.b16 %v360, %v359
      %v380 = vpack.c.b16 %v362, %v361
      %v381 = vpack.c.b16 %v364, %v363
      %v382 = vpack.c.b16 %v366, %v365
      %v383 = vpack.c.b16 %v368, %v367
      %v384 = vpack.c.b16 %v370, %v369
      %v385 = vpack.c.b16 %v372, %v371
      %v386 = vpack.c.b16 %v374, %v373
      %v387 = vpack.c.b16 %v376, %v375
      %v388 = vpack.c.b16 %v378, %v377
      %v394 = vunpack.c.l.b16 %v334
      %v395 = vunpack.c.l.b16 %v335
      %v396 = vunpack.c.l.b16 %v336
      %v397 = vunpack.c.l.b16 %v337
      %v398 = vunpack.c.l.b16 %v338
      %v399 = vpack.c.b16 %v395, %v394
      %v400 = vpack.c.b16 %v397, %v396
      %v401 = vpack.c.b16 %v398, %v398
      %vm404 = vcmask 293888
      %v406 = vsel %vm404, %v379, 0
      %v409 = vsel %vm404, %v380, 0
      %v412 = vsel %vm404, %v381, 0
      %v415 = vsel %vm404, %v382, 0
      %v418 = vsel %vm404, %v383, 0
      %v421 = vsel %vm404, %v384, 0
      %v424 = vsel %vm404, %v385, 0
      %v427 = vsel %vm404, %v386, 0
      %v430 = vsel %vm404, %v387, 0
      %v433 = vsel %vm404, %v388, 0
      %vm435 = vcmask 1041408
      %v437 = vsel %vm435, %v401, 0
      %439 = vmatprep.subr.bf16.mxu0 0
      %440 = vmatpush1.bf16.msra.mxu0 %v399
      %441 = vmatprep.subr.bf16.mxu0 0
      %442 = vmatpush1.bf16.msra.mxu0 %v400
      %443 = vmatprep.subr.bf16.mxu0 0
      %444 = vmatpush1.bf16.msra.mxu0 %v437
      %445 = vmatprep.subr.bf16.mxu0 0
      %446 = vmatpush1.bf16.msra.mxu0 0
      %447 = vmatprep.subr.bf16.mxu0 0
      %448 = vmatpush1.bf16.msra.mxu0 0
      %449 = vmatprep.subr.bf16.mxu0 0
      %450 = vmatpush1.bf16.msra.mxu0 0
      %451 = vmatprep.subr.bf16.mxu0 0
      %452 = vmatpush1.bf16.msra.mxu0 0
      %453 = vmatprep.subr.bf16.mxu0 0
      %454 = vmatpush1.bf16.msra.mxu0 0
      %455 = vmatprep.subr.bf16.mxu0 0
      %456 = vmatpush1.bf16.msra.mxu0 0
      %457 = vmatprep.subr.bf16.mxu0 0
      %458 = vmatpush1.bf16.msra.mxu0 0
      %459 = vmatprep.subr.bf16.mxu0 0
      %460 = vmatpush1.bf16.msra.mxu0 0
      %461 = vmatprep.subr.bf16.mxu0 0
      %462 = vmatpush1.bf16.msra.mxu0 0
      %463 = vmatprep.subr.bf16.mxu0 0
      %464 = vmatpush1.bf16.msra.mxu0 0
      %465 = vmatprep.subr.bf16.mxu0 0
      %466 = vmatpush1.bf16.msra.mxu0 0
      %467 = vmatprep.subr.bf16.mxu0 0
      %468 = vmatpush1.bf16.msra.mxu0 0
      %469 = vmatprep.subr.bf16.mxu0 0
      %470 = vmatpush1.bf16.msra.mxu0 0
      %471 = vmatprep.mubr.bf16.mxu0 0
      %472 = vmatmul.mubr.bf16.gmra.mrb[0].mxu0 %v406
      %v473 = vpop.f32.mrb[0].mxu0
      %v474 = vadd.f32 0.0, %v473
      %v475 = vpop.f32.mrb[0].mxu0
      %v476 = vpop.f32.mrb[0].mxu0
      %v477 = vadd.f32 0.0, %v476
      %v478 = vpop.f32.mrb[0].mxu0
      %479 = vmatprep.mubr.bf16.mxu0 0
      %480 = vmatmul.mubr.bf16.gmra.mrb[0].mxu0 %v409
      %v481 = vpop.f32.mrb[0].mxu0
      %v482 = vadd.f32 0.0, %v481
      %v483 = vpop.f32.mrb[0].mxu0
      %v484 = vpop.f32.mrb[0].mxu0
      %v485 = vadd.f32 0.0, %v484
      %v486 = vpop.f32.mrb[0].mxu0
      %487 = vmatprep.mubr.bf16.mxu0 0
      %488 = vmatmul.mubr.bf16.gmra.mrb[0].mxu0 %v412
      %v489 = vpop.f32.mrb[0].mxu0
      %v490 = vadd.f32 0.0, %v489
      %v491 = vpop.f32.mrb[0].mxu0
      %v492 = vpop.f32.mrb[0].mxu0
      %v493 = vadd.f32 0.0, %v492
      %v494 = vpop.f32.mrb[0].mxu0
      %495 = vmatprep.mubr.bf16.mxu0 0
      %496 = vmatmul.mubr.bf16.gmra.mrb[0].mxu0 %v415
      %v497 = vpop.f32.mrb[0].mxu0
      %v498 = vadd.f32 0.0, %v497
      %v499 = vpop.f32.mrb[0].mxu0
      %v500 = vpop.f32.mrb[0].mxu0
      %v501 = vadd.f32 0.0, %v500
      %v502 = vpop.f32.mrb[0].mxu0
      %503 = vmatprep.mubr.bf16.mxu0 0
      %504 = vmatmul.mubr.bf16.gmra.mrb[0].mxu0 %v418
      %v505 = vpop.f32.mrb[0].mxu0
      %v506 = vadd.f32 0.0, %v505
      %v507 = vpop.f32.mrb[0].mxu0
      %v508 = vpop.f32.mrb[0].mxu0
      %v509 = vadd.f32 0.0, %v508
      %v510 = vpop.f32.mrb[0].mxu0
      %511 = vmatprep.mubr.bf16.mxu0 0
      %512 = vmatmul.mubr.bf16.gmra.mrb[0].mxu0 %v421
      %v513 = vpop.f32.mrb[0].mxu0
      %v514 = vadd.f32 0.0, %v513
      %v515 = vpop.f32.mrb[0].mxu0
      %v516 = vpop.f32.mrb[0].mxu0
      %v517 = vadd.f32 0.0, %v516
      %v518 = vpop.f32.mrb[0].mxu0
      %519 = vmatprep.mubr.bf16.mxu0 0
      %520 = vmatmul.mubr.bf16.gmra.mrb[0].mxu0 %v424
      %v521 = vpop.f32.mrb[0].mxu0
      %v522 = vadd.f32 0.0, %v521
      %v523 = vpop.f32.mrb[0].mxu0
      %v524 = vpop.f32.mrb[0].mxu0
      %v525 = vadd.f32 0.0, %v524
      %v526 = vpop.f32.mrb[0].mxu0
      %527 = vmatprep.mubr.bf16.mxu0 0
      %528 = vmatmul.mubr.bf16.gmra.mrb[0].mxu0 %v427
      %v529 = vpop.f32.mrb[0].mxu0
      %v530 = vadd.f32 0.0, %v529
      %v531 = vpop.f32.mrb[0].mxu0
      %v532 = vpop.f32.mrb[0].mxu0
      %v533 = vadd.f32 0.0, %v532
      %v534 = vpop.f32.mrb[0].mxu0
      %535 = vmatprep.mubr.bf16.mxu0 0
      %536 = vmatmul.mubr.bf16.gmra.mrb[0].mxu0 %v430
      %v537 = vpop.f32.mrb[0].mxu0
      %v538 = vadd.f32 0.0, %v537
      %v539 = vpop.f32.mrb[0].mxu0
      %v540 = vpop.f32.mrb[0].mxu0
      %v541 = vadd.f32 0.0, %v540
      %v542 = vpop.f32.mrb[0].mxu0
      %543 = vmatprep.mubr.bf16.mxu0 0
      %544 = vmatmul.mubr.bf16.gmra.mrb[0].mxu0 %v433
      %v545 = vpop.f32.mrb[0].mxu0
      %v546 = vadd.f32 0.0, %v545
      %v547 = vpop.f32.mrb[0].mxu0
      %v548 = vpop.f32.mrb[0].mxu0
      %v549 = vadd.f32 0.0, %v548
      %v550 = vpop.f32.mrb[0].mxu0
      %551 = vdwg.mxu0
      %v552 = vld [vmem:[%s3] sm:$0x1]
      %v554 = vlaneseq
      %v555 = vshrl.u32 %v554, 7
      %v556 = vsub.s32 0, %v555
      %v557 = vrot.slane %v552, %v556
      %v559 = vmul.f32 %v474, %v557
      %v560 = vmul.f32 %v477, %v557
      %v561 = vmul.f32 %v482, %v557
      %v562 = vmul.f32 %v485, %v557
      %v563 = vmul.f32 %v490, %v557
      %v564 = vmul.f32 %v493, %v557
      %v565 = vmul.f32 %v498, %v557
      %v566 = vmul.f32 %v501, %v557
      %v567 = vmul.f32 %v506, %v557
      %v568 = vmul.f32 %v509, %v557
      %v569 = vmul.f32 %v514, %v557
      %v570 = vmul.f32 %v517, %v557
      %v571 = vmul.f32 %v522, %v557
      %v572 = vmul.f32 %v525, %v557
      %v573 = vmul.f32 %v530, %v557
      %v574 = vmul.f32 %v533, %v557
      %v575 = vmul.f32 %v538, %v557
      %v576 = vmul.f32 %v541, %v557
      %v577 = vmul.f32 %v546, %v557
      %v578 = vmul.f32 %v549, %v557
      %v579 = vld [vmem:[%s4] sm:$0x1]
      %v581 = vlaneseq
      %v582 = vshrl.u32 %v581, 7
      %v583 = vsub.s32 0, %v582
      %v584 = vrot.slane %v579, %v583
      %v586 = vadd.f32 %v559, %v584
      %v587 = vadd.f32 %v560, %v584
      %v588 = vadd.f32 %v561, %v584
      %v589 = vadd.f32 %v562, %v584
      %v590 = vadd.f32 %v563, %v584
      %v591 = vadd.f32 %v564, %v584
      %v592 = vadd.f32 %v565, %v584
      %v593 = vadd.f32 %v566, %v584
      %v594 = vadd.f32 %v567, %v584
      %v595 = vadd.f32 %v568, %v584
      %v596 = vadd.f32 %v569, %v584
      %v597 = vadd.f32 %v570, %v584
      %v598 = vadd.f32 %v571, %v584
      %v599 = vadd.f32 %v572, %v584
      %v600 = vadd.f32 %v573, %v584
      %v601 = vadd.f32 %v574, %v584
      %v602 = vadd.f32 %v575, %v584
      %v603 = vadd.f32 %v576, %v584
      %v604 = vadd.f32 %v577, %v584
      %v605 = vadd.f32 %v578, %v584
      %v606 = vmax.f32 %v586, 0.0
      %v607 = vmax.f32 %v587, 0.0
      %v608 = vmax.f32 %v588, 0.0
      %v609 = vmax.f32 %v589, 0.0
      %v610 = vmax.f32 %v590, 0.0
      %v611 = vmax.f32 %v591, 0.0
      %v612 = vmax.f32 %v592, 0.0
      %v613 = vmax.f32 %v593, 0.0
      %v614 = vmax.f32 %v594, 0.0
      %v615 = vmax.f32 %v595, 0.0
      %v616 = vmax.f32 %v596, 0.0
      %v617 = vmax.f32 %v597, 0.0
      %v618 = vmax.f32 %v598, 0.0
      %v619 = vmax.f32 %v599, 0.0
      %v620 = vmax.f32 %v600, 0.0
      %v621 = vmax.f32 %v601, 0.0
      %v622 = vmax.f32 %v602, 0.0
      %v623 = vmax.f32 %v603, 0.0
      %v624 = vmax.f32 %v604, 0.0
      %v625 = vmax.f32 %v605, 0.0
      %v626 = vpack.c.bf16 %v607, %v606
      %v627 = vpack.c.bf16 %v609, %v608
      %v628 = vpack.c.bf16 %v611, %v610
      %v629 = vpack.c.bf16 %v613, %v612
      %v630 = vpack.c.bf16 %v615, %v614
      %v631 = vpack.c.bf16 %v617, %v616
      %v632 = vpack.c.bf16 %v619, %v618
      %v633 = vpack.c.bf16 %v621, %v620
      %v634 = vpack.c.bf16 %v623, %v622
      %v635 = vpack.c.bf16 %v625, %v624
      %v646 = vunpack.c.l.b16 %v626
      %v647 = vunpack.c.h.b16 %v626
      %v648 = vunpack.c.l.b16 %v627
      %v649 = vunpack.c.h.b16 %v627
      %v650 = vunpack.c.l.b16 %v628
      %v651 = vunpack.c.h.b16 %v628
      %v652 = vunpack.c.l.b16 %v629
      %v653 = vunpack.c.h.b16 %v629
      %v654 = vunpack.c.l.b16 %v630
      %v655 = vunpack.c.h.b16 %v630
      %v656 = vunpack.c.l.b16 %v631
      %v657 = vunpack.c.h.b16 %v631
      %v658 = vunpack.c.l.b16 %v632
      %v659 = vunpack.c.h.b16 %v632
      %v660 = vunpack.c.l.b16 %v633
      %v661 = vunpack.c.h.b16 %v633
      %v662 = vunpack.c.l.b16 %v634
      %v663 = vunpack.c.h.b16 %v634
      %v664 = vunpack.c.l.b16 %v635
      %v665 = vunpack.c.h.b16 %v635
      %v666 = vpack.c.b16 %v646, %v646
      %v667 = vpack.c.b16 %v647, %v647
      %v668 = vpack.c.b16 %v648, %v648
      %v669 = vpack.c.b16 %v649, %v649
      %v670 = vpack.c.b16 %v650, %v650
      %v671 = vpack.c.b16 %v651, %v651
      %v672 = vpack.c.b16 %v652, %v652
      %v673 = vpack.c.b16 %v653, %v653
      %v674 = vpack.c.b16 %v654, %v654
      %v675 = vpack.c.b16 %v655, %v655
      %v676 = vpack.c.b16 %v656, %v656
      %v677 = vpack.c.b16 %v657, %v657
      %v678 = vpack.c.b16 %v658, %v658
      %v679 = vpack.c.b16 %v659, %v659
      %v680 = vpack.c.b16 %v660, %v660
      %v681 = vpack.c.b16 %v661, %v661
      %v682 = vpack.c.b16 %v662, %v662
      %v683 = vpack.c.b16 %v663, %v663
      %v684 = vpack.c.b16 %v664, %v664
      %v685 = vpack.c.b16 %v665, %v665
      %vm686 = vsmask.f32 256
      %vm687 = vsmask.f32 4368
      %vm688 = vmor %vm686, %vm687
      %v690 = vshrl.u32 %v666, 16
      %v692 = vrot.slane %v690, 7
      %v693 = vshll.u32 %v666, 16
      %v695 = vor.u32 %v692, %v693
      %v696 = vrot.slane %v692, 4
      %v698 = vshrl.u32 %v667, 16
      %v700 = vrot.slane %v698, 7
      %v701 = vshll.u32 %v667, 16
      %v703 = vor.u32 %v700, %v701
      %v704 = vsel %vm688, %v696, %v703
      %v705 = vrot.slane %v700, 4
      %v707 = vshrl.u32 %v668, 16
      %v709 = vrot.slane %v707, 7
      %v710 = vshll.u32 %v668, 16
      %v712 = vor.u32 %v709, %v710
      %v713 = vrot.slane %v709, 4
      %v715 = vshrl.u32 %v669, 16
      %v717 = vrot.slane %v715, 7
      %v718 = vshll.u32 %v669, 16
      %v720 = vor.u32 %v717, %v718
      %v721 = vsel %vm688, %v713, %v720
      %v722 = vrot.slane %v717, 4
      %v724 = vshrl.u32 %v670, 16
      %v726 = vrot.slane %v724, 7
      %v727 = vshll.u32 %v670, 16
      %v729 = vor.u32 %v726, %v727
      %v730 = vrot.slane %v726, 4
      %v732 = vshrl.u32 %v671, 16
      %v734 = vrot.slane %v732, 7
      %v735 = vshll.u32 %v671, 16
      %v737 = vor.u32 %v734, %v735
      %v738 = vsel %vm688, %v730, %v737
      %v739 = vrot.slane %v734, 4
      %v741 = vshrl.u32 %v672, 16
      %v743 = vrot.slane %v741, 7
      %v744 = vshll.u32 %v672, 16
      %v746 = vor.u32 %v743, %v744
      %v747 = vrot.slane %v743, 4
      %v749 = vshrl.u32 %v673, 16
      %v751 = vrot.slane %v749, 7
      %v752 = vshll.u32 %v673, 16
      %v754 = vor.u32 %v751, %v752
      %v755 = vsel %vm688, %v747, %v754
      %v756 = vrot.slane %v751, 4
      %v758 = vshrl.u32 %v674, 16
      %v760 = vrot.slane %v758, 7
      %v761 = vshll.u32 %v674, 16
      %v763 = vor.u32 %v760, %v761
      %v764 = vrot.slane %v760, 4
      %v766 = vshrl.u32 %v675, 16
      %v768 = vrot.slane %v766, 7
      %v769 = vshll.u32 %v675, 16
      %v771 = vor.u32 %v768, %v769
      %v772 = vsel %vm688, %v764, %v771
      %v773 = vrot.slane %v768, 4
      %v775 = vshrl.u32 %v676, 16
      %v777 = vrot.slane %v775, 7
      %v778 = vshll.u32 %v676, 16
      %v780 = vor.u32 %v777, %v778
      %v781 = vrot.slane %v777, 4
      %v783 = vshrl.u32 %v677, 16
      %v785 = vrot.slane %v783, 7
      %v786 = vshll.u32 %v677, 16
      %v788 = vor.u32 %v785, %v786
      %v789 = vsel %vm688, %v781, %v788
      %v790 = vrot.slane %v785, 4
      %v792 = vshrl.u32 %v678, 16
      %v794 = vrot.slane %v792, 7
      %v795 = vshll.u32 %v678, 16
      %v797 = vor.u32 %v794, %v795
      %v798 = vrot.slane %v794, 4
      %v800 = vshrl.u32 %v679, 16
      %v802 = vrot.slane %v800, 7
      %v803 = vshll.u32 %v679, 16
      %v805 = vor.u32 %v802, %v803
      %v806 = vsel %vm688, %v798, %v805
      %v807 = vrot.slane %v802, 4
      %v809 = vshrl.u32 %v680, 16
      %v811 = vrot.slane %v809, 7
      %v812 = vshll.u32 %v680, 16
      %v814 = vor.u32 %v811, %v812
      %v815 = vrot.slane %v811, 4
      %v817 = vshrl.u32 %v681, 16
      %v819 = vrot.slane %v817, 7
      %v820 = vshll.u32 %v681, 16
      %v822 = vor.u32 %v819, %v820
      %v823 = vsel %vm688, %v815, %v822
      %v824 = vrot.slane %v819, 4
      %v826 = vshrl.u32 %v682, 16
      %v828 = vrot.slane %v826, 7
      %v829 = vshll.u32 %v682, 16
      %v831 = vor.u32 %v828, %v829
      %v832 = vrot.slane %v828, 4
      %v834 = vshrl.u32 %v683, 16
      %v836 = vrot.slane %v834, 7
      %v837 = vshll.u32 %v683, 16
      %v839 = vor.u32 %v836, %v837
      %v840 = vsel %vm688, %v832, %v839
      %v841 = vrot.slane %v836, 4
      %v843 = vshrl.u32 %v684, 16
      %v845 = vrot.slane %v843, 7
      %v846 = vshll.u32 %v684, 16
      %v848 = vor.u32 %v845, %v846
      %v849 = vrot.slane %v845, 4
      %v851 = vshrl.u32 %v685, 16
      %v853 = vrot.slane %v851, 7
      %v854 = vshll.u32 %v685, 16
      %v856 = vor.u32 %v853, %v854
      %v857 = vsel %vm688, %v849, %v856
      %v858 = vrot.slane %v853, 4
      %vm889 = vcmask 60416
      %vm890 = vsmask.f32 7938
      %vm891 = vmand %vm889, %vm890
      %v892 = vld [vmem:[#allocation2] sm:$0xf]
      %v893 = vsel %vm891, %v695, %v892
      %894 = vst [vmem:[#allocation2] sm:$0xf] %v893
      %vm895 = vcmask 60416
      %896 = vst.msk [vmem:[#allocation2 + $0x4] sm:$0xf] %vm895, %v704
      %vm897 = vcmask 57344
      %vm898 = vmand %vm897, %vm686
      %v899 = vld [vmem:[#allocation2 + $0x8] sm:$0x1]
      %v900 = vsel %vm898, %v705, %v899
      %901 = vst [vmem:[#allocation2 + $0x8] sm:$0x1] %v900
      %v902 = vld [vmem:[#allocation2 + $0xc] sm:$0xf]
      %v903 = vsel %vm891, %v712, %v902
      %904 = vst [vmem:[#allocation2 + $0xc] sm:$0xf] %v903
      %905 = vst.msk [vmem:[#allocation2 + $0x10] sm:$0xf] %vm895, %v721
      %v906 = vld [vmem:[#allocation2 + $0x14] sm:$0x1]
      %v907 = vsel %vm898, %v722, %v906
      %908 = vst [vmem:[#allocation2 + $0x14] sm:$0x1] %v907
      %v909 = vld [vmem:[#allocation2 + $0x18] sm:$0xf]
      %v910 = vsel %vm891, %v729, %v909
      %911 = vst [vmem:[#allocation2 + $0x18] sm:$0xf] %v910
      %912 = vst.msk [vmem:[#allocation2 + $0x1c] sm:$0xf] %vm895, %v738
      %v913 = vld [vmem:[#allocation2 + $0x20] sm:$0x1]
      %v914 = vsel %vm898, %v739, %v913
      %915 = vst [vmem:[#allocation2 + $0x20] sm:$0x1] %v914
      %v916 = vld [vmem:[#allocation2 + $0x24] sm:$0xf]
      %v917 = vsel %vm891, %v746, %v916
      %918 = vst [vmem:[#allocation2 + $0x24] sm:$0xf] %v917
      %919 = vst.msk [vmem:[#allocation2 + $0x28] sm:$0xf] %vm895, %v755
      %v920 = vld [vmem:[#allocation2 + $0x2c] sm:$0x1]
      %v921 = vsel %vm898, %v756, %v920
      %922 = vst [vmem:[#allocation2 + $0x2c] sm:$0x1] %v921
      %v923 = vld [vmem:[#allocation2 + $0x30] sm:$0xf]
      %v924 = vsel %vm891, %v763, %v923
      %925 = vst [vmem:[#allocation2 + $0x30] sm:$0xf] %v924
      %926 = vst.msk [vmem:[#allocation2 + $0x34] sm:$0xf] %vm895, %v772
      %v927 = vld [vmem:[#allocation2 + $0x38] sm:$0x1]
      %v928 = vsel %vm898, %v773, %v927
      %929 = vst [vmem:[#allocation2 + $0x38] sm:$0x1] %v928
      %v930 = vld [vmem:[#allocation2 + $0x3c] sm:$0xf]
      %v931 = vsel %vm891, %v780, %v930
      %932 = vst [vmem:[#allocation2 + $0x3c] sm:$0xf] %v931
      %933 = vst.msk [vmem:[#allocation2 + $0x40] sm:$0xf] %vm895, %v789
      %v934 = vld [vmem:[#allocation2 + $0x44] sm:$0x1]
      %v935 = vsel %vm898, %v790, %v934
      %936 = vst [vmem:[#allocation2 + $0x44] sm:$0x1] %v935
      %v937 = vld [vmem:[#allocation2 + $0x48] sm:$0xf]
      %v938 = vsel %vm891, %v797, %v937
      %939 = vst [vmem:[#allocation2 + $0x48] sm:$0xf] %v938
      %940 = vst.msk [vmem:[#allocation2 + $0x4c] sm:$0xf] %vm895, %v806
      %v941 = vld [vmem:[#allocation2 + $0x50] sm:$0x1]
      %v942 = vsel %vm898, %v807, %v941
      %943 = vst [vmem:[#allocation2 + $0x50] sm:$0x1] %v942
      %v944 = vld [vmem:[#allocation2 + $0x54] sm:$0xf]
      %v945 = vsel %vm891, %v814, %v944
      %946 = vst [vmem:[#allocation2 + $0x54] sm:$0xf] %v945
      %947 = vst.msk [vmem:[#allocation2 + $0x58] sm:$0xf] %vm895, %v823
      %v948 = vld [vmem:[#allocation2 + $0x5c] sm:$0x1]
      %v949 = vsel %vm898, %v824, %v948
      %950 = vst [vmem:[#allocation2 + $0x5c] sm:$0x1] %v949
      %v951 = vld [vmem:[#allocation2 + $0x60] sm:$0xf]
      %v952 = vsel %vm891, %v831, %v951
      %953 = vst [vmem:[#allocation2 + $0x60] sm:$0xf] %v952
      %954 = vst.msk [vmem:[#allocation2 + $0x64] sm:$0xf] %vm895, %v840
      %v955 = vld [vmem:[#allocation2 + $0x68] sm:$0x1]
      %v956 = vsel %vm898, %v841, %v955
      %957 = vst [vmem:[#allocation2 + $0x68] sm:$0x1] %v956
      %v958 = vld [vmem:[#allocation2 + $0x6c] sm:$0xf]
      %v959 = vsel %vm891, %v848, %v958
      %960 = vst [vmem:[#allocation2 + $0x6c] sm:$0xf] %v959
      %961 = vst.msk [vmem:[#allocation2 + $0x70] sm:$0xf] %vm895, %v857
      %v962 = vld [vmem:[#allocation2 + $0x74] sm:$0x1]
      %v963 = vsel %vm898, %v858, %v962
      %964 = vst [vmem:[#allocation2 + $0x74] sm:$0x1] %v963
      %v965 = vld [vmem:[#allocation2] sm:$0x1]
      %v966 = vsel %vm898, 0, %v965
      %967 = vst [vmem:[#allocation2] sm:$0x1] %v966
      %v968 = vld [vmem:[#allocation2 + $0xc] sm:$0x1]
      %v969 = vsel %vm898, 0, %v968
      %970 = vst [vmem:[#allocation2 + $0xc] sm:$0x1] %v969
      %v971 = vld [vmem:[#allocation2 + $0x18] sm:$0x1]
      %v972 = vsel %vm898, 0, %v971
      %973 = vst [vmem:[#allocation2 + $0x18] sm:$0x1] %v972
      %v974 = vld [vmem:[#allocation2 + $0x24] sm:$0x1]
      %v975 = vsel %vm898, 0, %v974
      %976 = vst [vmem:[#allocation2 + $0x24] sm:$0x1] %v975
      %v977 = vld [vmem:[#allocation2 + $0x30] sm:$0x1]
      %v978 = vsel %vm898, 0, %v977
      %979 = vst [vmem:[#allocation2 + $0x30] sm:$0x1] %v978
      %v980 = vld [vmem:[#allocation2 + $0x3c] sm:$0x1]
      %v981 = vsel %vm898, 0, %v980
      %982 = vst [vmem:[#allocation2 + $0x3c] sm:$0x1] %v981
      %v983 = vld [vmem:[#allocation2 + $0x48] sm:$0x1]
      %v984 = vsel %vm898, 0, %v983
      %985 = vst [vmem:[#allocation2 + $0x48] sm:$0x1] %v984
      %v986 = vld [vmem:[#allocation2 + $0x54] sm:$0x1]
      %v987 = vsel %vm898, 0, %v986
      %988 = vst [vmem:[#allocation2 + $0x54] sm:$0x1] %v987
      %v989 = vld [vmem:[#allocation2 + $0x60] sm:$0x1]
      %v990 = vsel %vm898, 0, %v989
      %991 = vst [vmem:[#allocation2 + $0x60] sm:$0x1] %v990
      %v992 = vld [vmem:[#allocation2 + $0x6c] sm:$0x1]
      %v993 = vsel %vm898, 0, %v992
      %994 = vst [vmem:[#allocation2 + $0x6c] sm:$0x1] %v993
      %vm995 = vmand %vm897, %vm890
      %v996 = vld [vmem:[#allocation2 + $0x8] sm:$0x1]
      %v997 = vsel %vm995, 0, %v996
      %998 = vst [vmem:[#allocation2 + $0x8] sm:$0x1] %v997
      %v999 = vld [vmem:[#allocation2 + $0x14] sm:$0x1]
      %v1000 = vsel %vm995, 0, %v999
      %1001 = vst [vmem:[#allocation2 + $0x14] sm:$0x1] %v1000
      %v1002 = vld [vmem:[#allocation2 + $0x20] sm:$0x1]
      %v1003 = vsel %vm995, 0, %v1002
      %1004 = vst [vmem:[#allocation2 + $0x20] sm:$0x1] %v1003
      %v1005 = vld [vmem:[#allocation2 + $0x2c] sm:$0x1]
      %v1006 = vsel %vm995, 0, %v1005
      %1007 = vst [vmem:[#allocation2 + $0x2c] sm:$0x1] %v1006
      %v1008 = vld [vmem:[#allocation2 + $0x38] sm:$0x1]
      %v1009 = vsel %vm995, 0, %v1008
      %1010 = vst [vmem:[#allocation2 + $0x38] sm:$0x1] %v1009
      %v1011 = vld [vmem:[#allocation2 + $0x44] sm:$0x1]
      %v1012 = vsel %vm995, 0, %v1011
      %1013 = vst [vmem:[#allocation2 + $0x44] sm:$0x1] %v1012
      %v1014 = vld [vmem:[#allocation2 + $0x50] sm:$0x1]
      %v1015 = vsel %vm995, 0, %v1014
      %1016 = vst [vmem:[#allocation2 + $0x50] sm:$0x1] %v1015
      %v1017 = vld [vmem:[#allocation2 + $0x5c] sm:$0x1]
      %v1018 = vsel %vm995, 0, %v1017
      %1019 = vst [vmem:[#allocation2 + $0x5c] sm:$0x1] %v1018
      %v1020 = vld [vmem:[#allocation2 + $0x68] sm:$0x1]
      %v1021 = vsel %vm995, 0, %v1020
      %1022 = vst [vmem:[#allocation2 + $0x68] sm:$0x1] %v1021
      %v1023 = vld [vmem:[#allocation2 + $0x74] sm:$0x1]
      %v1024 = vsel %vm995, 0, %v1023
      %1025 = vst [vmem:[#allocation2 + $0x74] sm:$0x1] %v1024
      %p1026 = scmp.eq.s32.totalorder %s23, 0
      // Predicated region
      $region49: #{inconv_forward.1} parent=47 // pred_check
        %p1027 = pneg %p1026
      $region50: #{inconv_forward.1} parent=47 // pred_check_branch
        %1029 = sbr.rel (%p1027) target = $region52
      $region51: #{inconv_forward.1} parent=47 // pred_region
        %1030 = vst.msk [vmem:[#allocation2] sm:$0xf] %vm895, 0
        %1031 = vst.msk [vmem:[#allocation2 + $0x4] sm:$0xf] %vm895, 0
        %vm1032 = vcmask 57344
        %1033 = vst.msk [vmem:[#allocation2 + $0x8] sm:$0x1] %vm1032, 0
      $region52: #{inconv_forward.1} parent=47 // pred_fallthru
        _
      %p1034 = scmp.eq.s32.totalorder %s23, 1
      // Predicated region
      $region53: #{inconv_forward.1} parent=47 // pred_check
        %p1035 = pneg %p1034
      $region54: #{inconv_forward.1} parent=47 // pred_check_branch
        %1037 = sbr.rel (%p1035) target = $region56
      $region55: #{inconv_forward.1} parent=47 // pred_region
        %s1038 = scalar_lea.vmem [#allocation2], 108
        %1039 = vst.msk [vmem:[%s1038] sm:$0xf] %vm895, 0
        %1040 = vst.msk [vmem:[%s1038 + $0x4] sm:$0xf] %vm895, 0
        %vm1041 = vcmask 57344
        %1042 = vst.msk [vmem:[%s1038 + $0x8] sm:$0x1] %vm1041, 0
      $region56: #{inconv_forward.1} parent=47 // pred_fallthru
        _
      %v1043 = vld [vmem:[#allocation2] sm:$0xf]
      %v1044 = vld [vmem:[#allocation2 + $0x4] sm:$0xf]
      %v1045 = vld [vmem:[#allocation2 + $0x8] sm:$0x1]
      %v1046 = vld [vmem:[#allocation2 + $0xc] sm:$0xf]
      %v1047 = vld [vmem:[#allocation2 + $0x10] sm:$0xf]
      %v1048 = vld [vmem:[#allocation2 + $0x14] sm:$0x1]
      %v1049 = vld [vmem:[#allocation2 + $0x18] sm:$0xf]
      %v1050 = vld [vmem:[#allocation2 + $0x1c] sm:$0xf]
      %v1051 = vld [vmem:[#allocation2 + $0x20] sm:$0x1]
      %v1052 = vld [vmem:[#allocation2 + $0x24] sm:$0xf]
      %v1053 = vld [vmem:[#allocation2 + $0x28] sm:$0xf]
      %v1054 = vld [vmem:[#allocation2 + $0x2c] sm:$0x1]
      %v1055 = vld [vmem:[#allocation2 + $0x30] sm:$0xf]
      %v1056 = vld [vmem:[#allocation2 + $0x34] sm:$0xf]
      %v1057 = vld [vmem:[#allocation2 + $0x38] sm:$0x1]
      %v1058 = vld [vmem:[#allocation2 + $0x3c] sm:$0xf]
      %v1059 = vld [vmem:[#allocation2 + $0x40] sm:$0xf]
      %v1060 = vld [vmem:[#allocation2 + $0x44] sm:$0x1]
      %v1061 = vld [vmem:[#allocation2 + $0x48] sm:$0xf]
      %v1062 = vld [vmem:[#allocation2 + $0x4c] sm:$0xf]
      %v1063 = vld [vmem:[#allocation2 + $0x50] sm:$0x1]
      %v1064 = vld [vmem:[#allocation2 + $0x54] sm:$0xf]
      %v1065 = vld [vmem:[#allocation2 + $0x58] sm:$0xf]
      %v1066 = vld [vmem:[#allocation2 + $0x5c] sm:$0x1]
      %v1067 = vld [vmem:[#allocation2 + $0x60] sm:$0xf]
      %v1068 = vld [vmem:[#allocation2 + $0x64] sm:$0xf]
      %v1069 = vld [vmem:[#allocation2 + $0x68] sm:$0x1]
      %v1070 = vld [vmem:[#allocation2 + $0x6c] sm:$0xf]
      %v1071 = vld [vmem:[#allocation2 + $0x70] sm:$0xf]
      %v1072 = vld [vmem:[#allocation2 + $0x74] sm:$0x1]
      %v1093 = vunpack.c.l.b16 %v1043
      %v1094 = vunpack.c.l.b16 %v1044
      %v1095 = vunpack.c.l.b16 %v1046
      %v1096 = vunpack.c.l.b16 %v1047
      %v1097 = vunpack.c.l.b16 %v1049
      %v1098 = vunpack.c.l.b16 %v1050
      %v1099 = vunpack.c.l.b16 %v1052
      %v1100 = vunpack.c.l.b16 %v1053
      %v1101 = vunpack.c.l.b16 %v1055
      %v1102 = vunpack.c.l.b16 %v1056
      %v1103 = vunpack.c.l.b16 %v1058
      %v1104 = vunpack.c.l.b16 %v1059
      %v1105 = vunpack.c.l.b16 %v1061
      %v1106 = vunpack.c.l.b16 %v1062
      %v1107 = vunpack.c.l.b16 %v1064
      %v1108 = vunpack.c.l.b16 %v1065
      %v1109 = vunpack.c.l.b16 %v1067
      %v1110 = vunpack.c.l.b16 %v1068
      %v1111 = vunpack.c.l.b16 %v1070
      %v1112 = vunpack.c.l.b16 %v1071
      %v1113 = vpack.c.b16 %v1094, %v1093
      %v1114 = vpack.c.b16 %v1096, %v1095
      %v1115 = vpack.c.b16 %v1098, %v1097
      %v1116 = vpack.c.b16 %v1100, %v1099
      %v1117 = vpack.c.b16 %v1102, %v1101
      %v1118 = vpack.c.b16 %v1104, %v1103
      %v1119 = vpack.c.b16 %v1106, %v1105
      %v1120 = vpack.c.b16 %v1108, %v1107
      %v1121 = vpack.c.b16 %v1110, %v1109
      %v1122 = vpack.c.b16 %v1112, %v1111
      %vm1133 = vcmask 64512
      %1134 = vst.msk [vmem:[#allocation3] sm:$0xff] %vm1133, %v1113
      %1135 = vst.msk [vmem:[#allocation3 + $0x8] sm:$0xff] %vm1133, %v1114
      %1136 = vst.msk [vmem:[#allocation3 + $0x10] sm:$0xff] %vm1133, %v1115
      %1137 = vst.msk [vmem:[#allocation3 + $0x18] sm:$0xff] %vm1133, %v1116
      %1138 = vst.msk [vmem:[#allocation3 + $0x20] sm:$0xff] %vm1133, %v1117
      %1139 = vst.msk [vmem:[#allocation3 + $0x28] sm:$0xff] %vm1133, %v1118
      %1140 = vst.msk [vmem:[#allocation3 + $0x30] sm:$0xff] %vm1133, %v1119
      %1141 = vst.msk [vmem:[#allocation3 + $0x38] sm:$0xff] %vm1133, %v1120
      %1142 = vst.msk [vmem:[#allocation3 + $0x40] sm:$0xff] %vm1133, %v1121
      %1143 = vst.msk [vmem:[#allocation3 + $0x48] sm:$0xff] %vm1133, %v1122
      %vm1144 = vsmask.f32 3328
      %vm1145 = vsmask.f32 7440
      %vm1146 = vmor %vm1144, %vm1145
      %v1148 = vshrl.u32 %v1043, 16
      %v1150 = vrot.slane %v1148, 4
      %v1151 = vshll.u32 %v1043, 16
      %v1153 = vrot.slane %v1151, 5
      %v1154 = vor.u32 %v1150, %v1153
      %v1155 = vrot.slane %v1154, 4
      %v1157 = vshll.u32 %v1044, 16
      %v1159 = vrot.slane %v1157, 5
      %v1160 = vsel %vm1146, %v1155, %v1159
      %v1161 = vshrl.u32 %v1044, 16
      %v1163 = vrot.slane %v1161, 4
      %v1164 = vor.u32 %v1163, %v1159
      %v1165 = vrot.slane %v1164, 4
      %v1167 = vshll.u32 %v1045, 16
      %v1169 = vrot.slane %v1167, 5
      %v1170 = vsel %vm1146, %v1165, %v1169
      %v1172 = vshrl.u32 %v1046, 16
      %v1174 = vrot.slane %v1172, 4
      %v1175 = vshll.u32 %v1046, 16
      %v1177 = vrot.slane %v1175, 5
      %v1178 = vor.u32 %v1174, %v1177
      %v1179 = vrot.slane %v1178, 4
      %v1181 = vshll.u32 %v1047, 16
      %v1183 = vrot.slane %v1181, 5
      %v1184 = vsel %vm1146, %v1179, %v1183
      %v1185 = vshrl.u32 %v1047, 16
      %v1187 = vrot.slane %v1185, 4
      %v1188 = vor.u32 %v1187, %v1183
      %v1189 = vrot.slane %v1188, 4
      %v1191 = vshll.u32 %v1048, 16
      %v1193 = vrot.slane %v1191, 5
      %v1194 = vsel %vm1146, %v1189, %v1193
      %v1196 = vshrl.u32 %v1049, 16
      %v1198 = vrot.slane %v1196, 4
      %v1199 = vshll.u32 %v1049, 16
      %v1201 = vrot.slane %v1199, 5
      %v1202 = vor.u32 %v1198, %v1201
      %v1203 = vrot.slane %v1202, 4
      %v1205 = vshll.u32 %v1050, 16
      %v1207 = vrot.slane %v1205, 5
      %v1208 = vsel %vm1146, %v1203, %v1207
      %v1209 = vshrl.u32 %v1050, 16
      %v1211 = vrot.slane %v1209, 4
      %v1212 = vor.u32 %v1211, %v1207
      %v1213 = vrot.slane %v1212, 4
      %v1215 = vshll.u32 %v1051, 16
      %v1217 = vrot.slane %v1215, 5
      %v1218 = vsel %vm1146, %v1213, %v1217
      %v1220 = vshrl.u32 %v1052, 16
      %v1222 = vrot.slane %v1220, 4
      %v1223 = vshll.u32 %v1052, 16
      %v1225 = vrot.slane %v1223, 5
      %v1226 = vor.u32 %v1222, %v1225
      %v1227 = vrot.slane %v1226, 4
      %v1229 = vshll.u32 %v1053, 16
      %v1231 = vrot.slane %v1229, 5
      %v1232 = vsel %vm1146, %v1227, %v1231
      %v1233 = vshrl.u32 %v1053, 16
      %v1235 = vrot.slane %v1233, 4
      %v1236 = vor.u32 %v1235, %v1231
      %v1237 = vrot.slane %v1236, 4
      %v1239 = vshll.u32 %v1054, 16
      %v1241 = vrot.slane %v1239, 5
      %v1242 = vsel %vm1146, %v1237, %v1241
      %v1244 = vshrl.u32 %v1055, 16
      %v1246 = vrot.slane %v1244, 4
      %v1247 = vshll.u32 %v1055, 16
      %v1249 = vrot.slane %v1247, 5
      %v1250 = vor.u32 %v1246, %v1249
      %v1251 = vrot.slane %v1250, 4
      %v1253 = vshll.u32 %v1056, 16
      %v1255 = vrot.slane %v1253, 5
      %v1256 = vsel %vm1146, %v1251, %v1255
      %v1257 = vshrl.u32 %v1056, 16
      %v1259 = vrot.slane %v1257, 4
      %v1260 = vor.u32 %v1259, %v1255
      %v1261 = vrot.slane %v1260, 4
      %v1263 = vshll.u32 %v1057, 16
      %v1265 = vrot.slane %v1263, 5
      %v1266 = vsel %vm1146, %v1261, %v1265
      %v1268 = vshrl.u32 %v1058, 16
      %v1270 = vrot.slane %v1268, 4
      %v1271 = vshll.u32 %v1058, 16
      %v1273 = vrot.slane %v1271, 5
      %v1274 = vor.u32 %v1270, %v1273
      %v1275 = vrot.slane %v1274, 4
      %v1277 = vshll.u32 %v1059, 16
      %v1279 = vrot.slane %v1277, 5
      %v1280 = vsel %vm1146, %v1275, %v1279
      %v1281 = vshrl.u32 %v1059, 16
      %v1283 = vrot.slane %v1281, 4
      %v1284 = vor.u32 %v1283, %v1279
      %v1285 = vrot.slane %v1284, 4
      %v1287 = vshll.u32 %v1060, 16
      %v1289 = vrot.slane %v1287, 5
      %v1290 = vsel %vm1146, %v1285, %v1289
      %v1292 = vshrl.u32 %v1061, 16
      %v1294 = vrot.slane %v1292, 4
      %v1295 = vshll.u32 %v1061, 16
      %v1297 = vrot.slane %v1295, 5
      %v1298 = vor.u32 %v1294, %v1297
      %v1299 = vrot.slane %v1298, 4
      %v1301 = vshll.u32 %v1062, 16
      %v1303 = vrot.slane %v1301, 5
      %v1304 = vsel %vm1146, %v1299, %v1303
      %v1305 = vshrl.u32 %v1062, 16
      %v1307 = vrot.slane %v1305, 4
      %v1308 = vor.u32 %v1307, %v1303
      %v1309 = vrot.slane %v1308, 4
      %v1311 = vshll.u32 %v1063, 16
      %v1313 = vrot.slane %v1311, 5
      %v1314 = vsel %vm1146, %v1309, %v1313
      %v1316 = vshrl.u32 %v1064, 16
      %v1318 = vrot.slane %v1316, 4
      %v1319 = vshll.u32 %v1064, 16
      %v1321 = vrot.slane %v1319, 5
      %v1322 = vor.u32 %v1318, %v1321
      %v1323 = vrot.slane %v1322, 4
      %v1325 = vshll.u32 %v1065, 16
      %v1327 = vrot.slane %v1325, 5
      %v1328 = vsel %vm1146, %v1323, %v1327
      %v1329 = vshrl.u32 %v1065, 16
      %v1331 = vrot.slane %v1329, 4
      %v1332 = vor.u32 %v1331, %v1327
      %v1333 = vrot.slane %v1332, 4
      %v1335 = vshll.u32 %v1066, 16
      %v1337 = vrot.slane %v1335, 5
      %v1338 = vsel %vm1146, %v1333, %v1337
      %v1340 = vshrl.u32 %v1067, 16
      %v1342 = vrot.slane %v1340, 4
      %v1343 = vshll.u32 %v1067, 16
      %v1345 = vrot.slane %v1343, 5
      %v1346 = vor.u32 %v1342, %v1345
      %v1347 = vrot.slane %v1346, 4
      %v1349 = vshll.u32 %v1068, 16
      %v1351 = vrot.slane %v1349, 5
      %v1352 = vsel %vm1146, %v1347, %v1351
      %v1353 = vshrl.u32 %v1068, 16
      %v1355 = vrot.slane %v1353, 4
      %v1356 = vor.u32 %v1355, %v1351
      %v1357 = vrot.slane %v1356, 4
      %v1359 = vshll.u32 %v1069, 16
      %v1361 = vrot.slane %v1359, 5
      %v1362 = vsel %vm1146, %v1357, %v1361
      %v1364 = vshrl.u32 %v1070, 16
      %v1366 = vrot.slane %v1364, 4
      %v1367 = vshll.u32 %v1070, 16
      %v1369 = vrot.slane %v1367, 5
      %v1370 = vor.u32 %v1366, %v1369
      %v1371 = vrot.slane %v1370, 4
      %v1373 = vshll.u32 %v1071, 16
      %v1375 = vrot.slane %v1373, 5
      %v1376 = vsel %vm1146, %v1371, %v1375
      %v1377 = vshrl.u32 %v1071, 16
      %v1379 = vrot.slane %v1377, 4
      %v1380 = vor.u32 %v1379, %v1375
      %v1381 = vrot.slane %v1380, 4
      %v1383 = vshll.u32 %v1072, 16
      %v1385 = vrot.slane %v1383, 5
      %v1386 = vsel %vm1146, %v1381, %v1385
      %v1387 = vunpack.c.l.b16 %v1160
      %v1388 = vunpack.c.l.b16 %v1170
      %v1389 = vunpack.c.l.b16 %v1184
      %v1390 = vunpack.c.l.b16 %v1194
      %v1391 = vunpack.c.l.b16 %v1208
      %v1392 = vunpack.c.l.b16 %v1218
      %v1393 = vunpack.c.l.b16 %v1232
      %v1394 = vunpack.c.l.b16 %v1242
      %v1395 = vunpack.c.l.b16 %v1256
      %v1396 = vunpack.c.l.b16 %v1266
      %v1397 = vunpack.c.l.b16 %v1280
      %v1398 = vunpack.c.l.b16 %v1290
      %v1399 = vunpack.c.l.b16 %v1304
      %v1400 = vunpack.c.l.b16 %v1314
      %v1401 = vunpack.c.l.b16 %v1328
      %v1402 = vunpack.c.l.b16 %v1338
      %v1403 = vunpack.c.l.b16 %v1352
      %v1404 = vunpack.c.l.b16 %v1362
      %v1405 = vunpack.c.l.b16 %v1376
      %v1406 = vunpack.c.l.b16 %v1386
      %v1407 = vpack.c.b16 %v1388, %v1387
      %v1408 = vpack.c.b16 %v1390, %v1389
      %v1409 = vpack.c.b16 %v1392, %v1391
      %v1410 = vpack.c.b16 %v1394, %v1393
      %v1411 = vpack.c.b16 %v1396, %v1395
      %v1412 = vpack.c.b16 %v1398, %v1397
      %v1413 = vpack.c.b16 %v1400, %v1399
      %v1414 = vpack.c.b16 %v1402, %v1401
      %v1415 = vpack.c.b16 %v1404, %v1403
      %v1416 = vpack.c.b16 %v1406, %v1405
      %1417 = vrot.lane.b32.xlu0 %v1407, 8
      %v1418 = vpop.permute.xlu0 %1417
      %1419 = vrot.lane.b32.xlu0 %v1408, 8
      %v1420 = vpop.permute.xlu0 %1419
      %1421 = vrot.lane.b32.xlu0 %v1409, 8
      %v1422 = vpop.permute.xlu0 %1421
      %1423 = vrot.lane.b32.xlu0 %v1410, 8
      %v1424 = vpop.permute.xlu0 %1423
      %1425 = vrot.lane.b32.xlu0 %v1411, 8
      %v1426 = vpop.permute.xlu0 %1425
      %1427 = vrot.lane.b32.xlu0 %v1412, 8
      %v1428 = vpop.permute.xlu0 %1427
      %1429 = vrot.lane.b32.xlu0 %v1413, 8
      %v1430 = vpop.permute.xlu0 %1429
      %1431 = vrot.lane.b32.xlu0 %v1414, 8
      %v1432 = vpop.permute.xlu0 %1431
      %1433 = vrot.lane.b32.xlu0 %v1415, 8
      %v1434 = vpop.permute.xlu0 %1433
      %1435 = vrot.lane.b32.xlu0 %v1416, 8
      %v1436 = vpop.permute.xlu0 %1435
      %vm1447 = vcmask 130112
      %1448 = vst.msk [vmem:[#allocation3] sm:$0xff] %vm1447, %v1418
      %1449 = vst.msk [vmem:[#allocation3 + $0x8] sm:$0xff] %vm1447, %v1420
      %1450 = vst.msk [vmem:[#allocation3 + $0x10] sm:$0xff] %vm1447, %v1422
      %1451 = vst.msk [vmem:[#allocation3 + $0x18] sm:$0xff] %vm1447, %v1424
      %1452 = vst.msk [vmem:[#allocation3 + $0x20] sm:$0xff] %vm1447, %v1426
      %1453 = vst.msk [vmem:[#allocation3 + $0x28] sm:$0xff] %vm1447, %v1428
      %1454 = vst.msk [vmem:[#allocation3 + $0x30] sm:$0xff] %vm1447, %v1430
      %1455 = vst.msk [vmem:[#allocation3 + $0x38] sm:$0xff] %vm1447, %v1432
      %1456 = vst.msk [vmem:[#allocation3 + $0x40] sm:$0xff] %vm1447, %v1434
      %1457 = vst.msk [vmem:[#allocation3 + $0x48] sm:$0xff] %vm1447, %v1436
      %vm1468 = vcmask 1042432
      %vm1469 = vcmask 1046532
      %vm1470 = vmor %vm1468, %vm1469
      %v1471 = vrot.slane %v1043, 5
      %v1472 = vrot.slane %v1471, 4
      %v1473 = vrot.slane %v1044, 5
      %v1474 = vsel %vm1470, %v1472, %v1473
      %v1475 = vrot.slane %v1473, 4
      %v1476 = vrot.slane %v1045, 5
      %v1477 = vsel %vm1470, %v1475, %v1476
      %v1478 = vrot.slane %v1046, 5
      %v1479 = vrot.slane %v1478, 4
      %v1480 = vrot.slane %v1047, 5
      %v1481 = vsel %vm1470, %v1479, %v1480
      %v1482 = vrot.slane %v1480, 4
      %v1483 = vrot.slane %v1048, 5
      %v1484 = vsel %vm1470, %v1482, %v1483
      %v1485 = vrot.slane %v1049, 5
      %v1486 = vrot.slane %v1485, 4
      %v1487 = vrot.slane %v1050, 5
      %v1488 = vsel %vm1470, %v1486, %v1487
      %v1489 = vrot.slane %v1487, 4
      %v1490 = vrot.slane %v1051, 5
      %v1491 = vsel %vm1470, %v1489, %v1490
      %v1492 = vrot.slane %v1052, 5
      %v1493 = vrot.slane %v1492, 4
      %v1494 = vrot.slane %v1053, 5
      %v1495 = vsel %vm1470, %v1493, %v1494
      %v1496 = vrot.slane %v1494, 4
      %v1497 = vrot.slane %v1054, 5
      %v1498 = vsel %vm1470, %v1496, %v1497
      %v1499 = vrot.slane %v1055, 5
      %v1500 = vrot.slane %v1499, 4
      %v1501 = vrot.slane %v1056, 5
      %v1502 = vsel %vm1470, %v1500, %v1501
      %v1503 = vrot.slane %v1501, 4
      %v1504 = vrot.slane %v1057, 5
      %v1505 = vsel %vm1470, %v1503, %v1504
      %v1506 = vrot.slane %v1058, 5
      %v1507 = vrot.slane %v1506, 4
      %v1508 = vrot.slane %v1059, 5
      %v1509 = vsel %vm1470, %v1507, %v1508
      %v1510 = vrot.slane %v1508, 4
      %v1511 = vrot.slane %v1060, 5
      %v1512 = vsel %vm1470, %v1510, %v1511
      %v1513 = vrot.slane %v1061, 5
      %v1514 = vrot.slane %v1513, 4
      %v1515 = vrot.slane %v1062, 5
      %v1516 = vsel %vm1470, %v1514, %v1515
      %v1517 = vrot.slane %v1515, 4
      %v1518 = vrot.slane %v1063, 5
      %v1519 = vsel %vm1470, %v1517, %v1518
      %v1520 = vrot.slane %v1064, 5
      %v1521 = vrot.slane %v1520, 4
      %v1522 = vrot.slane %v1065, 5
      %v1523 = vsel %vm1470, %v1521, %v1522
      %v1524 = vrot.slane %v1522, 4
      %v1525 = vrot.slane %v1066, 5
      %v1526 = vsel %vm1470, %v1524, %v1525
      %v1527 = vrot.slane %v1067, 5
      %v1528 = vrot.slane %v1527, 4
      %v1529 = vrot.slane %v1068, 5
      %v1530 = vsel %vm1470, %v1528, %v1529
      %v1531 = vrot.slane %v1529, 4
      %v1532 = vrot.slane %v1069, 5
      %v1533 = vsel %vm1470, %v1531, %v1532
      %v1534 = vrot.slane %v1070, 5
      %v1535 = vrot.slane %v1534, 4
      %v1536 = vrot.slane %v1071, 5
      %v1537 = vsel %vm1470, %v1535, %v1536
      %v1538 = vrot.slane %v1536, 4
      %v1539 = vrot.slane %v1072, 5
      %v1540 = vsel %vm1470, %v1538, %v1539
      %v1541 = vunpack.c.l.b16 %v1474
      %v1542 = vunpack.c.l.b16 %v1477
      %v1543 = vunpack.c.l.b16 %v1481
      %v1544 = vunpack.c.l.b16 %v1484
      %v1545 = vunpack.c.l.b16 %v1488
      %v1546 = vunpack.c.l.b16 %v1491
      %v1547 = vunpack.c.l.b16 %v1495
      %v1548 = vunpack.c.l.b16 %v1498
      %v1549 = vunpack.c.l.b16 %v1502
      %v1550 = vunpack.c.l.b16 %v1505
      %v1551 = vunpack.c.l.b16 %v1509
      %v1552 = vunpack.c.l.b16 %v1512
      %v1553 = vunpack.c.l.b16 %v1516
      %v1554 = vunpack.c.l.b16 %v1519
      %v1555 = vunpack.c.l.b16 %v1523
      %v1556 = vunpack.c.l.b16 %v1526
      %v1557 = vunpack.c.l.b16 %v1530
      %v1558 = vunpack.c.l.b16 %v1533
      %v1559 = vunpack.c.l.b16 %v1537
      %v1560 = vunpack.c.l.b16 %v1540
      %v1561 = vpack.c.b16 %v1542, %v1541
      %v1562 = vpack.c.b16 %v1544, %v1543
      %v1563 = vpack.c.b16 %v1546, %v1545
      %v1564 = vpack.c.b16 %v1548, %v1547
      %v1565 = vpack.c.b16 %v1550, %v1549
      %v1566 = vpack.c.b16 %v1552, %v1551
      %v1567 = vpack.c.b16 %v1554, %v1553
      %v1568 = vpack.c.b16 %v1556, %v1555
      %v1569 = vpack.c.b16 %v1558, %v1557
      %v1570 = vpack.c.b16 %v1560, %v1559
      %1571 = vrot.lane.b32.xlu0 %v1561, 16
      %v1572 = vpop.permute.xlu0 %1571
      %1573 = vrot.lane.b32.xlu0 %v1562, 16
      %v1574 = vpop.permute.xlu0 %1573
      %1575 = vrot.lane.b32.xlu0 %v1563, 16
      %v1576 = vpop.permute.xlu0 %1575
      %1577 = vrot.lane.b32.xlu0 %v1564, 16
      %v1578 = vpop.permute.xlu0 %1577
      %1579 = vrot.lane.b32.xlu0 %v1565, 16
      %v1580 = vpop.permute.xlu0 %1579
      %1581 = vrot.lane.b32.xlu0 %v1566, 16
      %v1582 = vpop.permute.xlu0 %1581
      %1583 = vrot.lane.b32.xlu0 %v1567, 16
      %v1584 = vpop.permute.xlu0 %1583
      %1585 = vrot.lane.b32.xlu0 %v1568, 16
      %v1586 = vpop.permute.xlu0 %1585
      %1587 = vrot.lane.b32.xlu0 %v1569, 16
      %v1588 = vpop.permute.xlu0 %1587
      %1589 = vrot.lane.b32.xlu0 %v1570, 16
      %v1590 = vpop.permute.xlu0 %1589
      %vm1601 = vcmask 195712
      %1602 = vst.msk [vmem:[#allocation3] sm:$0xff] %vm1601, %v1572
      %1603 = vst.msk [vmem:[#allocation3 + $0x8] sm:$0xff] %vm1601, %v1574
      %1604 = vst.msk [vmem:[#allocation3 + $0x10] sm:$0xff] %vm1601, %v1576
      %1605 = vst.msk [vmem:[#allocation3 + $0x18] sm:$0xff] %vm1601, %v1578
      %1606 = vst.msk [vmem:[#allocation3 + $0x20] sm:$0xff] %vm1601, %v1580
      %1607 = vst.msk [vmem:[#allocation3 + $0x28] sm:$0xff] %vm1601, %v1582
      %1608 = vst.msk [vmem:[#allocation3 + $0x30] sm:$0xff] %vm1601, %v1584
      %1609 = vst.msk [vmem:[#allocation3 + $0x38] sm:$0xff] %vm1601, %v1586
      %1610 = vst.msk [vmem:[#allocation3 + $0x40] sm:$0xff] %vm1601, %v1588
      %1611 = vst.msk [vmem:[#allocation3 + $0x48] sm:$0xff] %vm1601, %v1590
      %v1612 = vld [vmem:[#allocation3] sm:$0xff]
      %v1613 = vld [vmem:[#allocation3 + $0x8] sm:$0xff]
      %v1614 = vld [vmem:[#allocation3 + $0x10] sm:$0xff]
      %v1615 = vld [vmem:[#allocation3 + $0x18] sm:$0xff]
      %v1616 = vld [vmem:[#allocation3 + $0x20] sm:$0xff]
      %v1617 = vld [vmem:[#allocation3 + $0x28] sm:$0xff]
      %v1618 = vld [vmem:[#allocation3 + $0x30] sm:$0xff]
      %v1619 = vld [vmem:[#allocation3 + $0x38] sm:$0xff]
      %v1620 = vld [vmem:[#allocation3 + $0x40] sm:$0xff]
      %v1621 = vld [vmem:[#allocation3 + $0x48] sm:$0xff]
      %v1622 = vld [vmem:[%s2] sm:$0xf]
      %v1623 = vld [vmem:[%s2 + $0x4] sm:$0xf]
      %v1624 = vld [vmem:[%s2 + $0x8] sm:$0xf]
      %v1628 = vunpack.c.l.b16 %v1622
      %v1629 = vunpack.c.l.b16 %v1623
      %v1630 = vunpack.c.l.b16 %v1624
      %v1631 = vpack.c.b16 %v1629, %v1628
      %v1632 = vpack.c.b16 %v1630, %v1630
      %vm1634 = vcmask 195584
      %v1636 = vsel %vm1634, %v1612, 0
      %v1639 = vsel %vm1634, %v1613, 0
      %v1642 = vsel %vm1634, %v1614, 0
      %v1645 = vsel %vm1634, %v1615, 0
      %v1648 = vsel %vm1634, %v1616, 0
      %v1651 = vsel %vm1634, %v1617, 0
      %v1654 = vsel %vm1634, %v1618, 0
      %v1657 = vsel %vm1634, %v1619, 0
      %v1660 = vsel %vm1634, %v1620, 0
      %v1663 = vsel %vm1634, %v1621, 0
      %vm1665 = vcmask 1043456
      %v1667 = vsel %vm1665, %v1632, 0
      %1669 = vmatprep.subr.bf16.mxu0 0
      %1670 = vmatpush1.bf16.msra.mxu0 %v1631
      %1671 = vmatprep.subr.bf16.mxu0 0
      %1672 = vmatpush1.bf16.msra.mxu0 %v1667
      %1673 = vmatprep.subr.bf16.mxu0 0
      %1674 = vmatpush1.bf16.msra.mxu0 0
      %1675 = vmatprep.subr.bf16.mxu0 0
      %1676 = vmatpush1.bf16.msra.mxu0 0
      %1677 = vmatprep.subr.bf16.mxu0 0
      %1678 = vmatpush1.bf16.msra.mxu0 0
      %1679 = vmatprep.subr.bf16.mxu0 0
      %1680 = vmatpush1.bf16.msra.mxu0 0
      %1681 = vmatprep.subr.bf16.mxu0 0
      %1682 = vmatpush1.bf16.msra.mxu0 0
      %1683 = vmatprep.subr.bf16.mxu0 0
      %1684 = vmatpush1.bf16.msra.mxu0 0
      %1685 = vmatprep.subr.bf16.mxu0 0
      %1686 = vmatpush1.bf16.msra.mxu0 0
      %1687 = vmatprep.subr.bf16.mxu0 0
      %1688 = vmatpush1.bf16.msra.mxu0 0
      %1689 = vmatprep.subr.bf16.mxu0 0
      %1690 = vmatpush1.bf16.msra.mxu0 0
      %1691 = vmatprep.subr.bf16.mxu0 0
      %1692 = vmatpush1.bf16.msra.mxu0 0
      %1693 = vmatprep.subr.bf16.mxu0 0
      %1694 = vmatpush1.bf16.msra.mxu0 0
      %1695 = vmatprep.subr.bf16.mxu0 0
      %1696 = vmatpush1.bf16.msra.mxu0 0
      %1697 = vmatprep.subr.bf16.mxu0 0
      %1698 = vmatpush1.bf16.msra.mxu0 0
      %1699 = vmatprep.subr.bf16.mxu0 0
      %1700 = vmatpush1.bf16.msra.mxu0 0
      %1701 = vmatprep.mubr.bf16.mxu0 0
      %1702 = vmatmul.mubr.bf16.gmra.mrb[0].mxu0 %v1636
      %v1703 = vpop.f32.mrb[0].mxu0
      %v1704 = vadd.f32 0.0, %v1703
      %v1705 = vpop.f32.mrb[0].mxu0
      %v1706 = vpop.f32.mrb[0].mxu0
      %v1707 = vadd.f32 0.0, %v1706
      %v1708 = vpop.f32.mrb[0].mxu0
      %1709 = vmatprep.mubr.bf16.mxu0 0
      %1710 = vmatmul.mubr.bf16.gmra.mrb[0].mxu0 %v1639
      %v1711 = vpop.f32.mrb[0].mxu0
      %v1712 = vadd.f32 0.0, %v1711
      %v1713 = vpop.f32.mrb[0].mxu0
      %v1714 = vpop.f32.mrb[0].mxu0
      %v1715 = vadd.f32 0.0, %v1714
      %v1716 = vpop.f32.mrb[0].mxu0
      %1717 = vmatprep.mubr.bf16.mxu0 0
      %1718 = vmatmul.mubr.bf16.gmra.mrb[0].mxu0 %v1642
      %v1719 = vpop.f32.mrb[0].mxu0
      %v1720 = vadd.f32 0.0, %v1719
      %v1721 = vpop.f32.mrb[0].mxu0
      %v1722 = vpop.f32.mrb[0].mxu0
      %v1723 = vadd.f32 0.0, %v1722
      %v1724 = vpop.f32.mrb[0].mxu0
      %1725 = vmatprep.mubr.bf16.mxu0 0
      %1726 = vmatmul.mubr.bf16.gmra.mrb[0].mxu0 %v1645
      %v1727 = vpop.f32.mrb[0].mxu0
      %v1728 = vadd.f32 0.0, %v1727
      %v1729 = vpop.f32.mrb[0].mxu0
      %v1730 = vpop.f32.mrb[0].mxu0
      %v1731 = vadd.f32 0.0, %v1730
      %v1732 = vpop.f32.mrb[0].mxu0
      %1733 = vmatprep.mubr.bf16.mxu0 0
      %1734 = vmatmul.mubr.bf16.gmra.mrb[0].mxu0 %v1648
      %v1735 = vpop.f32.mrb[0].mxu0
      %v1736 = vadd.f32 0.0, %v1735
      %v1737 = vpop.f32.mrb[0].mxu0
      %v1738 = vpop.f32.mrb[0].mxu0
      %v1739 = vadd.f32 0.0, %v1738
      %v1740 = vpop.f32.mrb[0].mxu0
      %1741 = vmatprep.mubr.bf16.mxu0 0
      %1742 = vmatmul.mubr.bf16.gmra.mrb[0].mxu0 %v1651
      %v1743 = vpop.f32.mrb[0].mxu0
      %v1744 = vadd.f32 0.0, %v1743
      %v1745 = vpop.f32.mrb[0].mxu0
      %v1746 = vpop.f32.mrb[0].mxu0
      %v1747 = vadd.f32 0.0, %v1746
      %v1748 = vpop.f32.mrb[0].mxu0
      %1749 = vmatprep.mubr.bf16.mxu0 0
      %1750 = vmatmul.mubr.bf16.gmra.mrb[0].mxu0 %v1654
      %v1751 = vpop.f32.mrb[0].mxu0
      %v1752 = vadd.f32 0.0, %v1751
      %v1753 = vpop.f32.mrb[0].mxu0
      %v1754 = vpop.f32.mrb[0].mxu0
      %v1755 = vadd.f32 0.0, %v1754
      %v1756 = vpop.f32.mrb[0].mxu0
      %1757 = vmatprep.mubr.bf16.mxu0 0
      %1758 = vmatmul.mubr.bf16.gmra.mrb[0].mxu0 %v1657
      %v1759 = vpop.f32.mrb[0].mxu0
      %v1760 = vadd.f32 0.0, %v1759
      %v1761 = vpop.f32.mrb[0].mxu0
      %v1762 = vpop.f32.mrb[0].mxu0
      %v1763 = vadd.f32 0.0, %v1762
      %v1764 = vpop.f32.mrb[0].mxu0
      %1765 = vmatprep.mubr.bf16.mxu0 0
      %1766 = vmatmul.mubr.bf16.gmra.mrb[0].mxu0 %v1660
      %v1767 = vpop.f32.mrb[0].mxu0
      %v1768 = vadd.f32 0.0, %v1767
      %v1769 = vpop.f32.mrb[0].mxu0
      %v1770 = vpop.f32.mrb[0].mxu0
      %v1771 = vadd.f32 0.0, %v1770
      %v1772 = vpop.f32.mrb[0].mxu0
      %1773 = vmatprep.mubr.bf16.mxu0 0
      %1774 = vmatmul.mubr.bf16.gmra.mrb[0].mxu0 %v1663
      %v1775 = vpop.f32.mrb[0].mxu0
      %v1776 = vadd.f32 0.0, %v1775
      %v1777 = vpop.f32.mrb[0].mxu0
      %v1778 = vpop.f32.mrb[0].mxu0
      %v1779 = vadd.f32 0.0, %v1778
      %v1780 = vpop.f32.mrb[0].mxu0
      %1781 = vdwg.mxu0
      %1798 = vrot.lane.b32.xlu0 %v1712, 120
      %v1799 = vpop.permute.xlu0 %1798
      %1800 = vrot.lane.b32.xlu0 %v1715, 120
      %v1801 = vpop.permute.xlu0 %1800
      %1802 = vrot.lane.b32.xlu0 %v1720, 120
      %v1803 = vpop.permute.xlu0 %1802
      %1804 = vrot.lane.b32.xlu0 %v1723, 120
      %v1805 = vpop.permute.xlu0 %1804
      %1806 = vrot.lane.b32.xlu0 %v1728, 120
      %v1807 = vpop.permute.xlu0 %1806
      %1808 = vrot.lane.b32.xlu0 %v1731, 120
      %v1809 = vpop.permute.xlu0 %1808
      %1810 = vrot.lane.b32.xlu0 %v1736, 120
      %v1811 = vpop.permute.xlu0 %1810
      %1812 = vrot.lane.b32.xlu0 %v1739, 120
      %v1813 = vpop.permute.xlu0 %1812
      %1814 = vrot.lane.b32.xlu0 %v1744, 120
      %v1815 = vpop.permute.xlu0 %1814
      %1816 = vrot.lane.b32.xlu0 %v1747, 120
      %v1817 = vpop.permute.xlu0 %1816
      %1818 = vrot.lane.b32.xlu0 %v1752, 120
      %v1819 = vpop.permute.xlu0 %1818
      %1820 = vrot.lane.b32.xlu0 %v1755, 120
      %v1821 = vpop.permute.xlu0 %1820
      %1822 = vrot.lane.b32.xlu0 %v1760, 120
      %v1823 = vpop.permute.xlu0 %1822
      %1824 = vrot.lane.b32.xlu0 %v1763, 120
      %v1825 = vpop.permute.xlu0 %1824
      %1826 = vrot.lane.b32.xlu0 %v1768, 120
      %v1827 = vpop.permute.xlu0 %1826
      %1828 = vrot.lane.b32.xlu0 %v1771, 120
      %v1829 = vpop.permute.xlu0 %1828
      %v1846 = vadd.f32 %v1704, %v1799
      %v1847 = vadd.f32 %v1707, %v1801
      %v1848 = vadd.f32 %v1712, %v1803
      %v1849 = vadd.f32 %v1715, %v1805
      %v1850 = vadd.f32 %v1720, %v1807
      %v1851 = vadd.f32 %v1723, %v1809
      %v1852 = vadd.f32 %v1728, %v1811
      %v1853 = vadd.f32 %v1731, %v1813
      %v1854 = vadd.f32 %v1736, %v1815
      %v1855 = vadd.f32 %v1739, %v1817
      %v1856 = vadd.f32 %v1744, %v1819
      %v1857 = vadd.f32 %v1747, %v1821
      %v1858 = vadd.f32 %v1752, %v1823
      %v1859 = vadd.f32 %v1755, %v1825
      %v1860 = vadd.f32 %v1760, %v1827
      %v1861 = vadd.f32 %v1763, %v1829
      %1864 = vrot.lane.b32.xlu0 %v1720, 112
      %v1865 = vpop.permute.xlu0 %1864
      %1866 = vrot.lane.b32.xlu0 %v1723, 112
      %v1867 = vpop.permute.xlu0 %1866
      %1868 = vrot.lane.b32.xlu0 %v1728, 112
      %v1869 = vpop.permute.xlu0 %1868
      %1870 = vrot.lane.b32.xlu0 %v1731, 112
      %v1871 = vpop.permute.xlu0 %1870
      %1872 = vrot.lane.b32.xlu0 %v1736, 112
      %v1873 = vpop.permute.xlu0 %1872
      %1874 = vrot.lane.b32.xlu0 %v1739, 112
      %v1875 = vpop.permute.xlu0 %1874
      %1876 = vrot.lane.b32.xlu0 %v1744, 112
      %v1877 = vpop.permute.xlu0 %1876
      %1878 = vrot.lane.b32.xlu0 %v1747, 112
      %v1879 = vpop.permute.xlu0 %1878
      %1880 = vrot.lane.b32.xlu0 %v1752, 112
      %v1881 = vpop.permute.xlu0 %1880
      %1882 = vrot.lane.b32.xlu0 %v1755, 112
      %v1883 = vpop.permute.xlu0 %1882
      %1884 = vrot.lane.b32.xlu0 %v1760, 112
      %v1885 = vpop.permute.xlu0 %1884
      %1886 = vrot.lane.b32.xlu0 %v1763, 112
      %v1887 = vpop.permute.xlu0 %1886
      %1888 = vrot.lane.b32.xlu0 %v1768, 112
      %v1889 = vpop.permute.xlu0 %1888
      %1890 = vrot.lane.b32.xlu0 %v1771, 112
      %v1891 = vpop.permute.xlu0 %1890
      %1892 = vrot.lane.b32.xlu0 %v1776, 112
      %v1893 = vpop.permute.xlu0 %1892
      %1894 = vrot.lane.b32.xlu0 %v1779, 112
      %v1895 = vpop.permute.xlu0 %1894
      %v1912 = vadd.f32 %v1846, %v1865
      %v1913 = vadd.f32 %v1847, %v1867
      %v1914 = vadd.f32 %v1848, %v1869
      %v1915 = vadd.f32 %v1849, %v1871
      %v1916 = vadd.f32 %v1850, %v1873
      %v1917 = vadd.f32 %v1851, %v1875
      %v1918 = vadd.f32 %v1852, %v1877
      %v1919 = vadd.f32 %v1853, %v1879
      %v1920 = vadd.f32 %v1854, %v1881
      %v1921 = vadd.f32 %v1855, %v1883
      %v1922 = vadd.f32 %v1856, %v1885
      %v1923 = vadd.f32 %v1857, %v1887
      %v1924 = vadd.f32 %v1858, %v1889
      %v1925 = vadd.f32 %v1859, %v1891
      %v1926 = vadd.f32 %v1860, %v1893
      %v1927 = vadd.f32 %v1861, %v1895
      %v1928 = vld [vmem:[%s5] sm:$0x1]
      %v1930 = vlaneseq
      %v1931 = vshrl.u32 %v1930, 7
      %v1932 = vsub.s32 0, %v1931
      %v1933 = vrot.slane %v1928, %v1932
      %v1935 = vmul.f32 %v1912, %v1933
      %v1936 = vmul.f32 %v1913, %v1933
      %v1937 = vmul.f32 %v1914, %v1933
      %v1938 = vmul.f32 %v1915, %v1933
      %v1939 = vmul.f32 %v1916, %v1933
      %v1940 = vmul.f32 %v1917, %v1933
      %v1941 = vmul.f32 %v1918, %v1933
      %v1942 = vmul.f32 %v1919, %v1933
      %v1943 = vmul.f32 %v1920, %v1933
      %v1944 = vmul.f32 %v1921, %v1933
      %v1945 = vmul.f32 %v1922, %v1933
      %v1946 = vmul.f32 %v1923, %v1933
      %v1947 = vmul.f32 %v1924, %v1933
      %v1948 = vmul.f32 %v1925, %v1933
      %v1949 = vmul.f32 %v1926, %v1933
      %v1950 = vmul.f32 %v1927, %v1933
      %v1951 = vld [vmem:[%s6] sm:$0x1]
      %v1953 = vlaneseq
      %v1954 = vshrl.u32 %v1953, 7
      %v1955 = vsub.s32 0, %v1954
      %v1956 = vrot.slane %v1951, %v1955
      %v1958 = vadd.f32 %v1935, %v1956
      %v1959 = vadd.f32 %v1936, %v1956
      %v1960 = vadd.f32 %v1937, %v1956
      %v1961 = vadd.f32 %v1938, %v1956
      %v1962 = vadd.f32 %v1939, %v1956
      %v1963 = vadd.f32 %v1940, %v1956
      %v1964 = vadd.f32 %v1941, %v1956
      %v1965 = vadd.f32 %v1942, %v1956
      %v1966 = vadd.f32 %v1943, %v1956
      %v1967 = vadd.f32 %v1944, %v1956
      %v1968 = vadd.f32 %v1945, %v1956
      %v1969 = vadd.f32 %v1946, %v1956
      %v1970 = vadd.f32 %v1947, %v1956
      %v1971 = vadd.f32 %v1948, %v1956
      %v1972 = vadd.f32 %v1949, %v1956
      %v1973 = vadd.f32 %v1950, %v1956
      %v1974 = vmax.f32 %v1958, 0.0
      %v1975 = vmax.f32 %v1959, 0.0
      %v1976 = vmax.f32 %v1960, 0.0
      %v1977 = vmax.f32 %v1961, 0.0
      %v1978 = vmax.f32 %v1962, 0.0
      %v1979 = vmax.f32 %v1963, 0.0
      %v1980 = vmax.f32 %v1964, 0.0
      %v1981 = vmax.f32 %v1965, 0.0
      %v1982 = vmax.f32 %v1966, 0.0
      %v1983 = vmax.f32 %v1967, 0.0
      %v1984 = vmax.f32 %v1968, 0.0
      %v1985 = vmax.f32 %v1969, 0.0
      %v1986 = vmax.f32 %v1970, 0.0
      %v1987 = vmax.f32 %v1971, 0.0
      %v1988 = vmax.f32 %v1972, 0.0
      %v1989 = vmax.f32 %v1973, 0.0
      %v1990 = vcombine.low %v1974, %v1978
      %v1991 = vcombine.high %v1974, %v1978
      %v1993 = vunpack.c.l.s4 1983009808
      %v1994 = vunpack.c.0.s8 %v1993
      %v1995 = vlaneseq
      %v1996 = vshrl.u32 %v1995, 7
      %v1997 = vsub.s32 %v1994, %v1996
      %v1998 = vrot.slane %v1990, %v1997
      %v2000 = vunpack.c.l.s4 1983009808
      %v2001 = vunpack.c.0.s8 %v2000
      %v2002 = vlaneseq
      %v2003 = vshrl.u32 %v2002, 7
      %v2004 = vsub.s32 %v2001, %v2003
      %v2005 = vrot.slane %v1991, %v2004
      %v2006 = vcombine.low %v1976, %v1980
      %v2007 = vcombine.high %v1976, %v1980
      %v2009 = vunpack.c.l.s4 1983009808
      %v2010 = vunpack.c.0.s8 %v2009
      %v2011 = vlaneseq
      %v2012 = vshrl.u32 %v2011, 7
      %v2013 = vsub.s32 %v2010, %v2012
      %v2014 = vrot.slane %v2006, %v2013
      %v2016 = vunpack.c.l.s4 1983009808
      %v2017 = vunpack.c.0.s8 %v2016
      %v2018 = vlaneseq
      %v2019 = vshrl.u32 %v2018, 7
      %v2020 = vsub.s32 %v2017, %v2019
      %v2021 = vrot.slane %v2007, %v2020
      %v2022 = vcombine.low %v1982, %v1986
      %v2023 = vcombine.high %v1982, %v1986
      %v2025 = vunpack.c.l.s4 1983009808
      %v2026 = vunpack.c.0.s8 %v2025
      %v2027 = vlaneseq
      %v2028 = vshrl.u32 %v2027, 7
      %v2029 = vsub.s32 %v2026, %v2028
      %v2030 = vrot.slane %v2022, %v2029
      %v2032 = vunpack.c.l.s4 1983009808
      %v2033 = vunpack.c.0.s8 %v2032
      %v2034 = vlaneseq
      %v2035 = vshrl.u32 %v2034, 7
      %v2036 = vsub.s32 %v2033, %v2035
      %v2037 = vrot.slane %v2023, %v2036
      %v2038 = vcombine.low %v1984, %v1988
      %v2039 = vcombine.high %v1984, %v1988
      %v2041 = vunpack.c.l.s4 1983009808
      %v2042 = vunpack.c.0.s8 %v2041
      %v2043 = vlaneseq
      %v2044 = vshrl.u32 %v2043, 7
      %v2045 = vsub.s32 %v2042, %v2044
      %v2046 = vrot.slane %v2038, %v2045
      %v2048 = vunpack.c.l.s4 1983009808
      %v2049 = vunpack.c.0.s8 %v2048
      %v2050 = vlaneseq
      %v2051 = vshrl.u32 %v2050, 7
      %v2052 = vsub.s32 %v2049, %v2051
      %v2053 = vrot.slane %v2039, %v2052
      %v2054 = vcombine.low %v1998, %v2014
      %v2055 = vcombine.high %v1998, %v2014
      %v2057 = vunpack.c.l.s4 1934713408
      %v2058 = vunpack.c.0.s8 %v2057
      %v2059 = vlaneseq
      %v2060 = vshrl.u32 %v2059, 7
      %v2061 = vsub.s32 %v2058, %v2060
      %v2062 = vrot.slane %v2054, %v2061
      %v2064 = vunpack.c.l.s4 1934713408
      %v2065 = vunpack.c.0.s8 %v2064
      %v2066 = vlaneseq
      %v2067 = vshrl.u32 %v2066, 7
      %v2068 = vsub.s32 %v2065, %v2067
      %v2069 = vrot.slane %v2055, %v2068
      %v2070 = vcombine.low %v2005, %v2021
      %v2071 = vcombine.high %v2005, %v2021
      %v2073 = vunpack.c.l.s4 1934713408
      %v2074 = vunpack.c.0.s8 %v2073
      %v2075 = vlaneseq
      %v2076 = vshrl.u32 %v2075, 7
      %v2077 = vsub.s32 %v2074, %v2076
      %v2078 = vrot.slane %v2070, %v2077
      %v2080 = vunpack.c.l.s4 1934713408
      %v2081 = vunpack.c.0.s8 %v2080
      %v2082 = vlaneseq
      %v2083 = vshrl.u32 %v2082, 7
      %v2084 = vsub.s32 %v2081, %v2083
      %v2085 = vrot.slane %v2071, %v2084
      %v2086 = vcombine.low %v2030, %v2046
      %v2087 = vcombine.high %v2030, %v2046
      %v2089 = vunpack.c.l.s4 1934713408
      %v2090 = vunpack.c.0.s8 %v2089
      %v2091 = vlaneseq
      %v2092 = vshrl.u32 %v2091, 7
      %v2093 = vsub.s32 %v2090, %v2092
      %v2094 = vrot.slane %v2086, %v2093
      %v2096 = vunpack.c.l.s4 1934713408
      %v2097 = vunpack.c.0.s8 %v2096
      %v2098 = vlaneseq
      %v2099 = vshrl.u32 %v2098, 7
      %v2100 = vsub.s32 %v2097, %v2099
      %v2101 = vrot.slane %v2087, %v2100
      %v2102 = vcombine.low %v2037, %v2053
      %v2103 = vcombine.high %v2037, %v2053
      %v2105 = vunpack.c.l.s4 1934713408
      %v2106 = vunpack.c.0.s8 %v2105
      %v2107 = vlaneseq
      %v2108 = vshrl.u32 %v2107, 7
      %v2109 = vsub.s32 %v2106, %v2108
      %v2110 = vrot.slane %v2102, %v2109
      %v2112 = vunpack.c.l.s4 1934713408
      %v2113 = vunpack.c.0.s8 %v2112
      %v2114 = vlaneseq
      %v2115 = vshrl.u32 %v2114, 7
      %v2116 = vsub.s32 %v2113, %v2115
      %v2117 = vrot.slane %v2103, %v2116
      %v2118 = vcombine.low %v2062, %v2094
      %v2119 = vcombine.high %v2062, %v2094
      %v2120 = vcombine.low %v2069, %v2101
      %v2121 = vcombine.high %v2069, %v2101
      %v2122 = vcombine.low %v2078, %v2110
      %v2123 = vcombine.high %v2078, %v2110
      %v2124 = vcombine.low %v2085, %v2117
      %v2125 = vcombine.high %v2085, %v2117
      %v2126 = vcombine.low %v1975, %v1979
      %v2127 = vcombine.high %v1975, %v1979
      %v2129 = vunpack.c.l.s4 1983009808
      %v2130 = vunpack.c.0.s8 %v2129
      %v2131 = vlaneseq
      %v2132 = vshrl.u32 %v2131, 7
      %v2133 = vsub.s32 %v2130, %v2132
      %v2134 = vrot.slane %v2126, %v2133
      %v2136 = vunpack.c.l.s4 1983009808
      %v2137 = vunpack.c.0.s8 %v2136
      %v2138 = vlaneseq
      %v2139 = vshrl.u32 %v2138, 7
      %v2140 = vsub.s32 %v2137, %v2139
      %v2141 = vrot.slane %v2127, %v2140
      %v2142 = vcombine.low %v1977, %v1981
      %v2143 = vcombine.high %v1977, %v1981
      %v2145 = vunpack.c.l.s4 1983009808
      %v2146 = vunpack.c.0.s8 %v2145
      %v2147 = vlaneseq
      %v2148 = vshrl.u32 %v2147, 7
      %v2149 = vsub.s32 %v2146, %v2148
      %v2150 = vrot.slane %v2142, %v2149
      %v2152 = vunpack.c.l.s4 1983009808
      %v2153 = vunpack.c.0.s8 %v2152
      %v2154 = vlaneseq
      %v2155 = vshrl.u32 %v2154, 7
      %v2156 = vsub.s32 %v2153, %v2155
      %v2157 = vrot.slane %v2143, %v2156
      %v2158 = vcombine.low %v1983, %v1987
      %v2159 = vcombine.high %v1983, %v1987
      %v2161 = vunpack.c.l.s4 1983009808
      %v2162 = vunpack.c.0.s8 %v2161
      %v2163 = vlaneseq
      %v2164 = vshrl.u32 %v2163, 7
      %v2165 = vsub.s32 %v2162, %v2164
      %v2166 = vrot.slane %v2158, %v2165
      %v2168 = vunpack.c.l.s4 1983009808
      %v2169 = vunpack.c.0.s8 %v2168
      %v2170 = vlaneseq
      %v2171 = vshrl.u32 %v2170, 7
      %v2172 = vsub.s32 %v2169, %v2171
      %v2173 = vrot.slane %v2159, %v2172
      %v2174 = vcombine.low %v1985, %v1989
      %v2175 = vcombine.high %v1985, %v1989
      %v2177 = vunpack.c.l.s4 1983009808
      %v2178 = vunpack.c.0.s8 %v2177
      %v2179 = vlaneseq
      %v2180 = vshrl.u32 %v2179, 7
      %v2181 = vsub.s32 %v2178, %v2180
      %v2182 = vrot.slane %v2174, %v2181
      %v2184 = vunpack.c.l.s4 1983009808
      %v2185 = vunpack.c.0.s8 %v2184
      %v2186 = vlaneseq
      %v2187 = vshrl.u32 %v2186, 7
      %v2188 = vsub.s32 %v2185, %v2187
      %v2189 = vrot.slane %v2175, %v2188
      %v2190 = vcombine.low %v2134, %v2150
      %v2191 = vcombine.high %v2134, %v2150
      %v2193 = vunpack.c.l.s4 1934713408
      %v2194 = vunpack.c.0.s8 %v2193
      %v2195 = vlaneseq
      %v2196 = vshrl.u32 %v2195, 7
      %v2197 = vsub.s32 %v2194, %v2196
      %v2198 = vrot.slane %v2190, %v2197
      %v2200 = vunpack.c.l.s4 1934713408
      %v2201 = vunpack.c.0.s8 %v2200
      %v2202 = vlaneseq
      %v2203 = vshrl.u32 %v2202, 7
      %v2204 = vsub.s32 %v2201, %v2203
      %v2205 = vrot.slane %v2191, %v2204
      %v2206 = vcombine.low %v2141, %v2157
      %v2207 = vcombine.high %v2141, %v2157
      %v2209 = vunpack.c.l.s4 1934713408
      %v2210 = vunpack.c.0.s8 %v2209
      %v2211 = vlaneseq
      %v2212 = vshrl.u32 %v2211, 7
      %v2213 = vsub.s32 %v2210, %v2212
      %v2214 = vrot.slane %v2206, %v2213
      %v2216 = vunpack.c.l.s4 1934713408
      %v2217 = vunpack.c.0.s8 %v2216
      %v2218 = vlaneseq
      %v2219 = vshrl.u32 %v2218, 7
      %v2220 = vsub.s32 %v2217, %v2219
      %v2221 = vrot.slane %v2207, %v2220
      %v2222 = vcombine.low %v2166, %v2182
      %v2223 = vcombine.high %v2166, %v2182
      %v2225 = vunpack.c.l.s4 1934713408
      %v2226 = vunpack.c.0.s8 %v2225
      %v2227 = vlaneseq
      %v2228 = vshrl.u32 %v2227, 7
      %v2229 = vsub.s32 %v2226, %v2228
      %v2230 = vrot.slane %v2222, %v2229
      %v2232 = vunpack.c.l.s4 1934713408
      %v2233 = vunpack.c.0.s8 %v2232
      %v2234 = vlaneseq
      %v2235 = vshrl.u32 %v2234, 7
      %v2236 = vsub.s32 %v2233, %v2235
      %v2237 = vrot.slane %v2223, %v2236
      %v2238 = vcombine.low %v2173, %v2189
      %v2239 = vcombine.high %v2173, %v2189
      %v2241 = vunpack.c.l.s4 1934713408
      %v2242 = vunpack.c.0.s8 %v2241
      %v2243 = vlaneseq
      %v2244 = vshrl.u32 %v2243, 7
      %v2245 = vsub.s32 %v2242, %v2244
      %v2246 = vrot.slane %v2238, %v2245
      %v2248 = vunpack.c.l.s4 1934713408
      %v2249 = vunpack.c.0.s8 %v2248
      %v2250 = vlaneseq
      %v2251 = vshrl.u32 %v2250, 7
      %v2252 = vsub.s32 %v2249, %v2251
      %v2253 = vrot.slane %v2239, %v2252
      %v2254 = vcombine.low %v2198, %v2230
      %v2255 = vcombine.high %v2198, %v2230
      %v2256 = vcombine.low %v2205, %v2237
      %v2257 = vcombine.high %v2205, %v2237
      %v2258 = vcombine.low %v2214, %v2246
      %v2259 = vcombine.high %v2214, %v2246
      %v2260 = vcombine.low %v2221, %v2253
      %v2261 = vcombine.high %v2221, %v2253
      %2263 = vrot.lane.b32.xlu0 %v2119, 8
      %v2264 = vpop.permute.xlu0 %2263
      %2267 = vrot.lane.b32.xlu0 %v2120, 16
      %v2268 = vpop.permute.xlu0 %2267
      %2271 = vrot.lane.b32.xlu0 %v2121, 24
      %v2272 = vpop.permute.xlu0 %2271
      %2275 = vrot.lane.b32.xlu0 %v2122, 32
      %v2276 = vpop.permute.xlu0 %2275
      %2279 = vrot.lane.b32.xlu0 %v2123, 40
      %v2280 = vpop.permute.xlu0 %2279
      %2283 = vrot.lane.b32.xlu0 %v2124, 48
      %v2284 = vpop.permute.xlu0 %2283
      %2287 = vrot.lane.b32.xlu0 %v2125, 56
      %v2288 = vpop.permute.xlu0 %2287
      %2291 = vrot.lane.b32.xlu0 %v2254, 64
      %v2292 = vpop.permute.xlu0 %2291
      %2295 = vrot.lane.b32.xlu0 %v2255, 72
      %v2296 = vpop.permute.xlu0 %2295
      %2299 = vrot.lane.b32.xlu0 %v2256, 80
      %v2300 = vpop.permute.xlu0 %2299
      %2303 = vrot.lane.b32.xlu0 %v2257, 88
      %v2304 = vpop.permute.xlu0 %2303
      %2307 = vrot.lane.b32.xlu0 %v2258, 96
      %v2308 = vpop.permute.xlu0 %2307
      %2311 = vrot.lane.b32.xlu0 %v2259, 104
      %v2312 = vpop.permute.xlu0 %2311
      %2315 = vrot.lane.b32.xlu0 %v2260, 112
      %v2316 = vpop.permute.xlu0 %2315
      %2319 = vrot.lane.b32.xlu0 %v2261, 120
      %v2320 = vpop.permute.xlu0 %2319
      %v2322 = vsel %vm1133, %v2118, %v2264
      %vm2323 = vcmask 130048
      %v2324 = vsel %vm2323, %v2322, %v2268
      %v2325 = vsel %vm1634, %v2324, %v2272
      %vm2326 = vcmask 261120
      %v2327 = vsel %vm2326, %v2325, %v2276
      %vm2328 = vcmask 326656
      %v2329 = vsel %vm2328, %v2327, %v2280
      %vm2330 = vcmask 392192
      %v2331 = vsel %vm2330, %v2329, %v2284
      %vm2332 = vcmask 457728
      %v2333 = vsel %vm2332, %v2331, %v2288
      %vm2334 = vcmask 523264
      %v2335 = vsel %vm2334, %v2333, %v2292
      %vm2336 = vcmask 588800
      %v2337 = vsel %vm2336, %v2335, %v2296
      %vm2338 = vcmask 654336
      %v2339 = vsel %vm2338, %v2337, %v2300
      %vm2340 = vcmask 719872
      %v2341 = vsel %vm2340, %v2339, %v2304
      %vm2342 = vcmask 785408
      %v2343 = vsel %vm2342, %v2341, %v2308
      %vm2344 = vcmask 850944
      %v2345 = vsel %vm2344, %v2343, %v2312
      %vm2346 = vcmask 916480
      %v2347 = vsel %vm2346, %v2345, %v2316
      %vm2348 = vcmask 982016
      %v2349 = vsel %vm2348, %v2347, %v2320
      %2350 = vst [vmem:[%s312] sm:$0xff] %v2349
      %p2351 = scmp.lt.s32.totalorder %s22, 1
      %s2352 = scalar_select %p2351, %s22, 1
      %p2353 = scmp.lt.s32.totalorder %s23, 1
      %s2354 = scalar_select %p2353, %s23, 1
      %s2355 = smul.addr %s2352, 2
      %s2356 = sadd.s32 %s2354, %s2355
      %s2357 = smul.addr %s2356, 8
      %s2358 = scalar_lea.vmem %s7, %s2357
      // Predicated region
      $region57: #{inconv_forward.1} parent=47 // pred_check
        %p2359 = pneg %p206
      $region58: #{inconv_forward.1} parent=47 // pred_check_branch
        %2361 = sbr.rel (%p2359) target = $region60
      $region59: #{inconv_forward.1} parent=47 // pred_region
        _
      $region60: #{inconv_forward.1} parent=47 // pred_fallthru
        _
    $region48: #{inconv_forward.1} parent=5 // pred_fallthru
      _
    %p2362 = scmp.le.s32.totalorder 2, %s13
    // Predicated region
    $region61: #{inconv_forward.1} parent=5 // pred_check
      %p2363 = pneg %p2362
    $region62: #{inconv_forward.1} parent=5 // pred_check_branch
      %2365 = sbr.rel (%p2363) target = $region64
    $region63: #{inconv_forward.1} parent=5 // pred_region
      %s2366 = ssub.s32 %s13, 2
      // Predicated region
      $region65: #{inconv_forward.1} parent=63 // pred_check
        %p2367 = pneg %p212
      $region66: #{inconv_forward.1} parent=63 // pred_check_branch
        %2369 = sbr.rel (%p2367) target = $region68
      $region67: #{inconv_forward.1} parent=63 // pred_region
        %p2370 = scmp.lt.s32.totalorder %s24, 1
        %s2371 = scalar_select %p2370, %s24, 1
        %p2372 = scmp.lt.s32.totalorder %s25, 1
        %s2373 = scalar_select %p2372, %s25, 1
        %s2374 = smul.addr %s2371, 2
        %s2375 = sadd.s32 %s2373, %s2374
        %s2376 = smul.addr %s2375, 8
        %s2377 = scalar_lea.vmem %s7, %s2376
      $region68: #{inconv_forward.1} parent=63 // pred_fallthru
        _
    $region64: #{inconv_forward.1} parent=5 // pred_fallthru
      _
  $region6: #{inconv_forward.1} parent=0 // loop_footer
    %s17 = sadd.s32 1, %s13
  $region7: #{inconv_forward.1} parent=0 // loop_footer_branch
    %12 = sbr.rel target = $region3
  $region8: #{inconv_forward.1} parent=0 // loop_exit
    _

</llo_original>
